<compile_context>
chip_gen: v5e
topology: v5e:2x2
jax: 0.10.0
libtpu: 0.0.40
codegen_flags: <defaults>
</compile_context>

<pallas_src>
import functools

import jax
import jax.numpy as jnp
from jax.experimental import pallas as pl
from jax.experimental.pallas import tpu as pltpu


def _round_up(n, m):
    return (n + m - 1) // m * m


# ----------------------------- Pallas kernel ------------------------------- #
def _rnn_seq_kernel(
    S, Bp,
    x_ref,     # (S*Bp, Ip)   time-major, batch-flattened one-hot inputs
    y_ref,     # (S*Bp, Qp)   mask / target selector
    wih0_ref,  # (Ip, Hp)     layer-0 input->hidden (transposed, padded)
    whh0_ref,  # (Hp, Hp)     layer-0 hidden->hidden (transposed, padded)
    b0_ref,    # (1, Hp)      bih0 + bhh0
    wih1_ref,  # (Hp, Hp)     layer-1 input->hidden
    whh1_ref,  # (Hp, Hp)     layer-1 hidden->hidden
    b1_ref,    # (1, Hp)      bih1 + bhh1
    wfc_ref,   # (Hp, Qp)     final linear
    bfc_ref,   # (1, Qp)
    out_ref,   # (S*Bp, Qp)   sigmoid(fc(h1)) * y
    h0_all,    # VMEM (S*Bp, Hp) scratch: layer-0 pre-activations, then h0_t
    h1_all,    # VMEM (S*Bp, Hp) scratch: layer-1 pre-activations, then h1_t
):
    f32 = jnp.float32
    Hp = whh0_ref.shape[0]

    # ---- layer 0 input projection: all timesteps in one batched MXU matmul ----
    h0_all[...] = (
        jnp.dot(x_ref[...], wih0_ref[...], preferred_element_type=f32)
        + b0_ref[...]
    )

    # ---- layer 0 recurrence: only the (Bp,Hp)@(Hp,Hp) matmul is serial ----
    whh0 = whh0_ref[...]

    def l0_step(t, h_prev):
        r = pl.multiple_of(t * Bp, Bp)
        z = h0_all[pl.ds(r, Bp), :] + jnp.dot(
            h_prev, whh0, preferred_element_type=f32)
        h = jnp.tanh(z)
        h0_all[pl.ds(r, Bp), :] = h
        return h

    h_init = jnp.zeros((Bp, Hp), f32)          # init_hidden(): zeros
    jax.lax.fori_loop(0, S, l0_step, h_init, unroll=True)

    # ---- layer 1 input projection (input = layer-0 outputs), batched ----
    h1_all[...] = (
        jnp.dot(h0_all[...], wih1_ref[...], preferred_element_type=f32)
        + b1_ref[...]
    )

    # ---- layer 1 recurrence ----
    whh1 = whh1_ref[...]

    def l1_step(t, h_prev):
        r = pl.multiple_of(t * Bp, Bp)
        z = h1_all[pl.ds(r, Bp), :] + jnp.dot(
            h_prev, whh1, preferred_element_type=f32)
        h = jnp.tanh(z)
        h1_all[pl.ds(r, Bp), :] = h
        return h

    jax.lax.fori_loop(0, S, l1_step, h_init, unroll=True)

    # ---- fc + sigmoid + mask: one batched matmul, lane-dense (Qp=128) store ----
    logits = (
        jnp.dot(h1_all[...], wfc_ref[...], preferred_element_type=f32)
        + bfc_ref[...]
    )
    out_ref[...] = jax.nn.sigmoid(logits) * y_ref[...]


# ------------------------------- wrapper ------------------------------------ #
def rnn_forward_pallas(x_bsf, y_bsq, params):
    """x_bsf: (B, S, 2*Q) float32 one-hot features; y_bsq: (B, S, Q) float32."""
    B, S, I = x_bsf.shape
    Q = y_bsq.shape[-1]
    H = params["w_hh0"].shape[0]

    # pad to native tile widths: sublanes (8) for batch, lanes (128) for features
    Bp = _round_up(B, 8)
    Ip = _round_up(I, 128)
    Hp = _round_up(H, 128)
    Qp = _round_up(Q, 128)

    f32 = jnp.float32

    # time-major, batch-padded, flattened to (S*Bp, feature) row blocks
    x_t = jnp.transpose(x_bsf, (1, 0, 2))                                   # (S, B, I)
    x_p = jnp.zeros((S, Bp, Ip), f32).at[:, :B, :I].set(x_t.astype(f32))
    x_flat = x_p.reshape(S * Bp, Ip)

    y_t = jnp.transpose(y_bsq, (1, 0, 2))                                   # (S, B, Q)
    y_p = jnp.zeros((S, Bp, Qp), f32).at[:, :B, :Q].set(y_t.astype(f32))
    y_flat = y_p.reshape(S * Bp, Qp)

    # weights: transpose so the kernel does plain (rows, K) @ (K, N); zero-pad.
    def padw(w_t, K, Kp, N, Np):
        return jnp.zeros((Kp, Np), f32).at[:K, :N].set(w_t.astype(f32))

    wih0 = padw(params["w_ih0"].T, I, Ip, H, Hp)
    whh0 = padw(params["w_hh0"].T, H, Hp, H, Hp)
    b0 = jnp.zeros((1, Hp), f32).at[0, :H].set(params["b_ih0"] + params["b_hh0"])
    wih1 = padw(params["w_ih1"].T, H, Hp, H, Hp)
    whh1 = padw(params["w_hh1"].T, H, Hp, H, Hp)
    b1 = jnp.zeros((1, Hp), f32).at[0, :H].set(params["b_ih1"] + params["b_hh1"])
    wfc = padw(params["w_fc"].T, H, Hp, Q, Qp)
    bfc = jnp.zeros((1, Qp), f32).at[0, :Q].set(params["b_fc"])

    vmem = pl.BlockSpec(memory_space=pltpu.MemorySpace.VMEM)

    out_flat = pl.pallas_call(
        functools.partial(_rnn_seq_kernel, S, Bp),
        out_shape=jax.ShapeDtypeStruct((S * Bp, Qp), f32),
        in_specs=[vmem] * 10,
        out_specs=vmem,
        scratch_shapes=[
            pltpu.VMEM((S * Bp, Hp), f32),
            pltpu.VMEM((S * Bp, Hp), f32),
        ],
    )(x_flat, y_flat, wih0, whh0, b0, wih1, whh1, b1, wfc, bfc)

    # drop padding, back to PyTorch's batch_first layout (B, S, Q)
    out = out_flat.reshape(S, Bp, Qp)[:, :B, :Q]
    return jnp.transpose(out, (1, 0, 2))


# --------------------------- pure-JAX reference ------------------------------ #
def rnn_forward_ref(x_bsf, y_bsq, params):
    B, S, I = x_bsf.shape
    H = params["w_hh0"].shape[0]

    def step(carry, xt):
        h0, h1 = carry
        h0 = jnp.tanh(
            xt @ params["w_ih0"].T + params["b_ih0"]
            + h0 @ params["w_hh0"].T + params["b_hh0"]
        )
        h1 = jnp.tanh(
            h0 @ params["w_ih1"].T + params["b_ih1"]
            + h1 @ params["w_hh1"].T + params["b_hh1"]
        )
        return (h0, h1), h1

    x_t = jnp.transpose(x_bsf, (1, 0, 2))
    (_, _), outs = jax.lax.scan(
        step, (jnp.zeros((B, H)), jnp.zeros((B, H))), x_t
    )
    outs = jnp.transpose(outs, (1, 0, 2))  # (B, S, H)
    logits = outs @ params["w_fc"].T + params["b_fc"]
    return jax.nn.sigmoid(logits) * y_bsq


# --------------------------------- main -------------------------------------- #
if __name__ == "__main__":
    # small shapes implied by the module's forward ('onehot' input_type)
    n_questions = 8
    input_size = 2 * n_questions
    hidden_dim = 32
    n_layers = 2
    batch = 4
    seq = 8

    key = jax.random.PRNGKey(0)
    keys = jax.random.split(key, 16)

    def uni(k, shape, bound):
        return jax.random.uniform(k, shape, jnp.float32, -bound, bound)

    # PyTorch-style uniform(-1/sqrt(H), 1/sqrt(H)) init
    kH = 1.0 / jnp.sqrt(hidden_dim)
    params = {
        "w_ih0": uni(keys[0], (hidden_dim, input_size), kH),
        "w_hh0": uni(keys[1], (hidden_dim, hidden_dim), kH),
        "b_ih0": uni(keys[2], (hidden_dim,), kH),
        "b_hh0": uni(keys[3], (hidden_dim,), kH),
        "w_ih1": uni(keys[4], (hidden_dim, hidden_dim), kH),
        "w_hh1": uni(keys[5], (hidden_dim, hidden_dim), kH),
        "b_ih1": uni(keys[6], (hidden_dim,), kH),
        "b_hh1": uni(keys[7], (hidden_dim,), kH),
        "w_fc": uni(keys[8], (n_questions, hidden_dim), kH),
        "b_fc": uni(keys[9], (n_questions,), kH),
    }

    # inputX: one-hot over 2*n_questions; inputY: per-question mask
    idx = jax.random.randint(keys[10], (batch, seq), 0, input_size)
    x = jax.nn.one_hot(idx, input_size, dtype=jnp.float32)        # (B, S, 2Q)
    y = (jax.random.uniform(keys[11], (batch, seq, n_questions)) > 0.5).astype(
        jnp.float32
    )                                                             # (B, S, Q)

    out = jax.block_until_ready(rnn_forward_pallas(x, y, params))
    ref = jax.block_until_ready(rnn_forward_ref(x, y, params))

    assert out.shape == (batch, seq, n_questions)
    assert jnp.allclose(out, ref, atol=1e-5, rtol=1e-5), float(
        jnp.max(jnp.abs(out - ref))
    )
    print("KERNEL_OK")
</pallas_src>

<mosaic_0001>
module attributes {stable_mosaic.version = 11 : i64} {
  func.func @_rnn_seq_kernel(%arg0: memref<64x128xf32, #tpu.memory_space<vmem>>, %arg1: memref<64x128xf32, #tpu.memory_space<vmem>>, %arg2: memref<128x128xf32, #tpu.memory_space<vmem>>, %arg3: memref<128x128xf32, #tpu.memory_space<vmem>>, %arg4: memref<1x128xf32, #tpu.memory_space<vmem>>, %arg5: memref<128x128xf32, #tpu.memory_space<vmem>>, %arg6: memref<128x128xf32, #tpu.memory_space<vmem>>, %arg7: memref<1x128xf32, #tpu.memory_space<vmem>>, %arg8: memref<128x128xf32, #tpu.memory_space<vmem>>, %arg9: memref<1x128xf32, #tpu.memory_space<vmem>>, %arg10: memref<64x128xf32, #tpu.memory_space<vmem>>, %arg11: memref<64x128xf32, #tpu.memory_space<vmem>>, %arg12: memref<64x128xf32, #tpu.memory_space<vmem>>) attributes {dimension_semantics = [], scalar_prefetch = 0 : i64, scratch_operands = 2 : i64, tpu.core_type = #tpu.core_type<tc>} {
    %c0 = arith.constant 0 : index
    %c0_0 = arith.constant 0 : index
    %0 = vector.load %arg0[%c0, %c0_0] : memref<64x128xf32, #tpu.memory_space<vmem>>, vector<64x128xf32>
    %c0_1 = arith.constant 0 : index
    %c0_2 = arith.constant 0 : index
    %1 = vector.load %arg2[%c0_1, %c0_2] : memref<128x128xf32, #tpu.memory_space<vmem>>, vector<128x128xf32>
    %cst = arith.constant dense<0.000000e+00> : vector<64x128xf32>
    %2 = tpu.matmul %0, %1, %cst {dimension_numbers = #tpu.dot_dimension_numbers<[1], [0], [0], [1], [0, 0, 1, 1], [], []>} : vector<64x128xf32>, vector<128x128xf32>, vector<64x128xf32> -> vector<64x128xf32>
    %c0_3 = arith.constant 0 : index
    %c0_4 = arith.constant 0 : index
    %3 = vector.load %arg4[%c0_3, %c0_4] : memref<1x128xf32, #tpu.memory_space<vmem>>, vector<1x128xf32>
    %4 = vector.broadcast %3 : vector<1x128xf32> to vector<64x128xf32>
    %5 = arith.addf %2, %4 : vector<64x128xf32>
    %c0_5 = arith.constant 0 : index
    %c0_6 = arith.constant 0 : index
    %6 = vector.load %arg11[%c0_5, %c0_6] : memref<64x128xf32, #tpu.memory_space<vmem>>, vector<64x128xf32>
    tpu.vector_store %arg11[%c0_5, %c0_6], %5 {strides = array<i32>} : memref<64x128xf32, #tpu.memory_space<vmem>>, vector<64x128xf32>,
    %c0_7 = arith.constant 0 : index
    %c0_8 = arith.constant 0 : index
    %7 = vector.load %arg3[%c0_7, %c0_8] : memref<128x128xf32, #tpu.memory_space<vmem>>, vector<128x128xf32>
    %cst_9 = arith.constant 0.000000e+00 : f32
    %8 = vector.broadcast %cst_9 : f32 to vector<8x128xf32>
    %c0_i32 = arith.constant 0 : i32
    %c8_i32 = arith.constant 8 : i32
    %9 = arith.muli %c0_i32, %c8_i32 : i32
    %10 = tpu.assume_multiple %9, 8 : i32
    %11 = arith.index_cast %10 : i32 to index
    %c0_10 = arith.constant 0 : index
    %12 = vector.load %arg11[%11, %c0_10] : memref<64x128xf32, #tpu.memory_space<vmem>>, vector<8x128xf32>
    %cst_11 = arith.constant dense<0.000000e+00> : vector<8x128xf32>
    %13 = tpu.matmul %8, %7, %cst_11 {dimension_numbers = #tpu.dot_dimension_numbers<[1], [0], [0], [1], [0, 0, 1, 1], [], []>} : vector<8x128xf32>, vector<128x128xf32>, vector<8x128xf32> -> vector<8x128xf32>
    %14 = arith.addf %12, %13 : vector<8x128xf32>
    %15 = math.tanh %14 : vector<8x128xf32>
    %16 = arith.index_cast %10 : i32 to index
    %c0_12 = arith.constant 0 : index
    %17 = vector.load %arg11[%16, %c0_12] : memref<64x128xf32, #tpu.memory_space<vmem>>, vector<8x128xf32>
    tpu.vector_store %arg11[%16, %c0_12], %15 {strides = array<i32>} : memref<64x128xf32, #tpu.memory_space<vmem>>, vector<8x128xf32>,
    %c1_i32 = arith.constant 1 : i32
    %c8_i32_13 = arith.constant 8 : i32
    %18 = arith.muli %c1_i32, %c8_i32_13 : i32
    %19 = tpu.assume_multiple %18, 8 : i32
    %20 = arith.index_cast %19 : i32 to index
    %c0_14 = arith.constant 0 : index
    %21 = vector.load %arg11[%20, %c0_14] : memref<64x128xf32, #tpu.memory_space<vmem>>, vector<8x128xf32>
    %cst_15 = arith.constant dense<0.000000e+00> : vector<8x128xf32>
    %22 = tpu.matmul %15, %7, %cst_15 {dimension_numbers = #tpu.dot_dimension_numbers<[1], [0], [0], [1], [0, 0, 1, 1], [], []>} : vector<8x128xf32>, vector<128x128xf32>, vector<8x128xf32> -> vector<8x128xf32>
    %23 = arith.addf %21, %22 : vector<8x128xf32>
    %24 = math.tanh %23 : vector<8x128xf32>
    %25 = arith.index_cast %19 : i32 to index
    %c0_16 = arith.constant 0 : index
    %26 = vector.load %arg11[%25, %c0_16] : memref<64x128xf32, #tpu.memory_space<vmem>>, vector<8x128xf32>
    tpu.vector_store %arg11[%25, %c0_16], %24 {strides = array<i32>} : memref<64x128xf32, #tpu.memory_space<vmem>>, vector<8x128xf32>,
    %c2_i32 = arith.constant 2 : i32
    %c8_i32_17 = arith.constant 8 : i32
    %27 = arith.muli %c2_i32, %c8_i32_17 : i32
    %28 = tpu.assume_multiple %27, 8 : i32
    %29 = arith.index_cast %28 : i32 to index
    %c0_18 = arith.constant 0 : index
    %30 = vector.load %arg11[%29, %c0_18] : memref<64x128xf32, #tpu.memory_space<vmem>>, vector<8x128xf32>
    %cst_19 = arith.constant dense<0.000000e+00> : vector<8x128xf32>
    %31 = tpu.matmul %24, %7, %cst_19 {dimension_numbers = #tpu.dot_dimension_numbers<[1], [0], [0], [1], [0, 0, 1, 1], [], []>} : vector<8x128xf32>, vector<128x128xf32>, vector<8x128xf32> -> vector<8x128xf32>
    %32 = arith.addf %30, %31 : vector<8x128xf32>
    %33 = math.tanh %32 : vector<8x128xf32>
    %34 = arith.index_cast %28 : i32 to index
    %c0_20 = arith.constant 0 : index
    %35 = vector.load %arg11[%34, %c0_20] : memref<64x128xf32, #tpu.memory_space<vmem>>, vector<8x128xf32>
    tpu.vector_store %arg11[%34, %c0_20], %33 {strides = array<i32>} : memref<64x128xf32, #tpu.memory_space<vmem>>, vector<8x128xf32>,
    %c3_i32 = arith.constant 3 : i32
    %c8_i32_21 = arith.constant 8 : i32
    %36 = arith.muli %c3_i32, %c8_i32_21 : i32
    %37 = tpu.assume_multiple %36, 8 : i32
    %38 = arith.index_cast %37 : i32 to index
    %c0_22 = arith.constant 0 : index
    %39 = vector.load %arg11[%38, %c0_22] : memref<64x128xf32, #tpu.memory_space<vmem>>, vector<8x128xf32>
    %cst_23 = arith.constant dense<0.000000e+00> : vector<8x128xf32>
    %40 = tpu.matmul %33, %7, %cst_23 {dimension_numbers = #tpu.dot_dimension_numbers<[1], [0], [0], [1], [0, 0, 1, 1], [], []>} : vector<8x128xf32>, vector<128x128xf32>, vector<8x128xf32> -> vector<8x128xf32>
    %41 = arith.addf %39, %40 : vector<8x128xf32>
    %42 = math.tanh %41 : vector<8x128xf32>
    %43 = arith.index_cast %37 : i32 to index
    %c0_24 = arith.constant 0 : index
    %44 = vector.load %arg11[%43, %c0_24] : memref<64x128xf32, #tpu.memory_space<vmem>>, vector<8x128xf32>
    tpu.vector_store %arg11[%43, %c0_24], %42 {strides = array<i32>} : memref<64x128xf32, #tpu.memory_space<vmem>>, vector<8x128xf32>,
    %c4_i32 = arith.constant 4 : i32
    %c8_i32_25 = arith.constant 8 : i32
    %45 = arith.muli %c4_i32, %c8_i32_25 : i32
    %46 = tpu.assume_multiple %45, 8 : i32
    %47 = arith.index_cast %46 : i32 to index
    %c0_26 = arith.constant 0 : index
    %48 = vector.load %arg11[%47, %c0_26] : memref<64x128xf32, #tpu.memory_space<vmem>>, vector<8x128xf32>
    %cst_27 = arith.constant dense<0.000000e+00> : vector<8x128xf32>
    %49 = tpu.matmul %42, %7, %cst_27 {dimension_numbers = #tpu.dot_dimension_numbers<[1], [0], [0], [1], [0, 0, 1, 1], [], []>} : vector<8x128xf32>, vector<128x128xf32>, vector<8x128xf32> -> vector<8x128xf32>
    %50 = arith.addf %48, %49 : vector<8x128xf32>
    %51 = math.tanh %50 : vector<8x128xf32>
    %52 = arith.index_cast %46 : i32 to index
    %c0_28 = arith.constant 0 : index
    %53 = vector.load %arg11[%52, %c0_28] : memref<64x128xf32, #tpu.memory_space<vmem>>, vector<8x128xf32>
    tpu.vector_store %arg11[%52, %c0_28], %51 {strides = array<i32>} : memref<64x128xf32, #tpu.memory_space<vmem>>, vector<8x128xf32>,
    %c5_i32 = arith.constant 5 : i32
    %c8_i32_29 = arith.constant 8 : i32
    %54 = arith.muli %c5_i32, %c8_i32_29 : i32
    %55 = tpu.assume_multiple %54, 8 : i32
    %56 = arith.index_cast %55 : i32 to index
    %c0_30 = arith.constant 0 : index
    %57 = vector.load %arg11[%56, %c0_30] : memref<64x128xf32, #tpu.memory_space<vmem>>, vector<8x128xf32>
    %cst_31 = arith.constant dense<0.000000e+00> : vector<8x128xf32>
    %58 = tpu.matmul %51, %7, %cst_31 {dimension_numbers = #tpu.dot_dimension_numbers<[1], [0], [0], [1], [0, 0, 1, 1], [], []>} : vector<8x128xf32>, vector<128x128xf32>, vector<8x128xf32> -> vector<8x128xf32>
    %59 = arith.addf %57, %58 : vector<8x128xf32>
    %60 = math.tanh %59 : vector<8x128xf32>
    %61 = arith.index_cast %55 : i32 to index
    %c0_32 = arith.constant 0 : index
    %62 = vector.load %arg11[%61, %c0_32] : memref<64x128xf32, #tpu.memory_space<vmem>>, vector<8x128xf32>
    tpu.vector_store %arg11[%61, %c0_32], %60 {strides = array<i32>} : memref<64x128xf32, #tpu.memory_space<vmem>>, vector<8x128xf32>,
    %c6_i32 = arith.constant 6 : i32
    %c8_i32_33 = arith.constant 8 : i32
    %63 = arith.muli %c6_i32, %c8_i32_33 : i32
    %64 = tpu.assume_multiple %63, 8 : i32
    %65 = arith.index_cast %64 : i32 to index
    %c0_34 = arith.constant 0 : index
    %66 = vector.load %arg11[%65, %c0_34] : memref<64x128xf32, #tpu.memory_space<vmem>>, vector<8x128xf32>
    %cst_35 = arith.constant dense<0.000000e+00> : vector<8x128xf32>
    %67 = tpu.matmul %60, %7, %cst_35 {dimension_numbers = #tpu.dot_dimension_numbers<[1], [0], [0], [1], [0, 0, 1, 1], [], []>} : vector<8x128xf32>, vector<128x128xf32>, vector<8x128xf32> -> vector<8x128xf32>
    %68 = arith.addf %66, %67 : vector<8x128xf32>
    %69 = math.tanh %68 : vector<8x128xf32>
    %70 = arith.index_cast %64 : i32 to index
    %c0_36 = arith.constant 0 : index
    %71 = vector.load %arg11[%70, %c0_36] : memref<64x128xf32, #tpu.memory_space<vmem>>, vector<8x128xf32>
    tpu.vector_store %arg11[%70, %c0_36], %69 {strides = array<i32>} : memref<64x128xf32, #tpu.memory_space<vmem>>, vector<8x128xf32>,
    %c7_i32 = arith.constant 7 : i32
    %c8_i32_37 = arith.constant 8 : i32
    %72 = arith.muli %c7_i32, %c8_i32_37 : i32
    %73 = tpu.assume_multiple %72, 8 : i32
    %74 = arith.index_cast %73 : i32 to index
    %c0_38 = arith.constant 0 : index
    %75 = vector.load %arg11[%74, %c0_38] : memref<64x128xf32, #tpu.memory_space<vmem>>, vector<8x128xf32>
    %cst_39 = arith.constant dense<0.000000e+00> : vector<8x128xf32>
    %76 = tpu.matmul %69, %7, %cst_39 {dimension_numbers = #tpu.dot_dimension_numbers<[1], [0], [0], [1], [0, 0, 1, 1], [], []>} : vector<8x128xf32>, vector<128x128xf32>, vector<8x128xf32> -> vector<8x128xf32>
    %77 = arith.addf %75, %76 : vector<8x128xf32>
    %78 = math.tanh %77 : vector<8x128xf32>
    %79 = arith.index_cast %73 : i32 to index
    %c0_40 = arith.constant 0 : index
    %80 = vector.load %arg11[%79, %c0_40] : memref<64x128xf32, #tpu.memory_space<vmem>>, vector<8x128xf32>
    tpu.vector_store %arg11[%79, %c0_40], %78 {strides = array<i32>} : memref<64x128xf32, #tpu.memory_space<vmem>>, vector<8x128xf32>,
    %c8_i32_41 = arith.constant 8 : i32
    %c0_42 = arith.constant 0 : index
    %c0_43 = arith.constant 0 : index
    %81 = vector.load %arg11[%c0_42, %c0_43] : memref<64x128xf32, #tpu.memory_space<vmem>>, vector<64x128xf32>
    %c0_44 = arith.constant 0 : index
    %c0_45 = arith.constant 0 : index
    %82 = vector.load %arg5[%c0_44, %c0_45] : memref<128x128xf32, #tpu.memory_space<vmem>>, vector<128x128xf32>
    %cst_46 = arith.constant dense<0.000000e+00> : vector<64x128xf32>
    %83 = tpu.matmul %81, %82, %cst_46 {dimension_numbers = #tpu.dot_dimension_numbers<[1], [0], [0], [1], [0, 0, 1, 1], [], []>} : vector<64x128xf32>, vector<128x128xf32>, vector<64x128xf32> -> vector<64x128xf32>
    %c0_47 = arith.constant 0 : index
    %c0_48 = arith.constant 0 : index
    %84 = vector.load %arg7[%c0_47, %c0_48] : memref<1x128xf32, #tpu.memory_space<vmem>>, vector<1x128xf32>
    %85 = vector.broadcast %84 : vector<1x128xf32> to vector<64x128xf32>
    %86 = arith.addf %83, %85 : vector<64x128xf32>
    %c0_49 = arith.constant 0 : index
    %c0_50 = arith.constant 0 : index
    %87 = vector.load %arg12[%c0_49, %c0_50] : memref<64x128xf32, #tpu.memory_space<vmem>>, vector<64x128xf32>
    tpu.vector_store %arg12[%c0_49, %c0_50], %86 {strides = array<i32>} : memref<64x128xf32, #tpu.memory_space<vmem>>, vector<64x128xf32>,
    %c0_51 = arith.constant 0 : index
    %c0_52 = arith.constant 0 : index
    %88 = vector.load %arg6[%c0_51, %c0_52] : memref<128x128xf32, #tpu.memory_space<vmem>>, vector<128x128xf32>
    %c0_i32_53 = arith.constant 0 : i32
    %c8_i32_54 = arith.constant 8 : i32
    %89 = arith.muli %c0_i32_53, %c8_i32_54 : i32
    %90 = tpu.assume_multiple %89, 8 : i32
    %91 = arith.index_cast %90 : i32 to index
    %c0_55 = arith.constant 0 : index
    %92 = vector.load %arg12[%91, %c0_55] : memref<64x128xf32, #tpu.memory_space<vmem>>, vector<8x128xf32>
    %cst_56 = arith.constant dense<0.000000e+00> : vector<8x128xf32>
    %93 = tpu.matmul %8, %88, %cst_56 {dimension_numbers = #tpu.dot_dimension_numbers<[1], [0], [0], [1], [0, 0, 1, 1], [], []>} : vector<8x128xf32>, vector<128x128xf32>, vector<8x128xf32> -> vector<8x128xf32>
    %94 = arith.addf %92, %93 : vector<8x128xf32>
    %95 = math.tanh %94 : vector<8x128xf32>
    %96 = arith.index_cast %90 : i32 to index
    %c0_57 = arith.constant 0 : index
    %97 = vector.load %arg12[%96, %c0_57] : memref<64x128xf32, #tpu.memory_space<vmem>>, vector<8x128xf32>
    tpu.vector_store %arg12[%96, %c0_57], %95 {strides = array<i32>} : memref<64x128xf32, #tpu.memory_space<vmem>>, vector<8x128xf32>,
    %c1_i32_58 = arith.constant 1 : i32
    %c8_i32_59 = arith.constant 8 : i32
    %98 = arith.muli %c1_i32_58, %c8_i32_59 : i32
    %99 = tpu.assume_multiple %98, 8 : i32
    %100 = arith.index_cast %99 : i32 to index
    %c0_60 = arith.constant 0 : index
    %101 = vector.load %arg12[%100, %c0_60] : memref<64x128xf32, #tpu.memory_space<vmem>>, vector<8x128xf32>
    %cst_61 = arith.constant dense<0.000000e+00> : vector<8x128xf32>
    %102 = tpu.matmul %95, %88, %cst_61 {dimension_numbers = #tpu.dot_dimension_numbers<[1], [0], [0], [1], [0, 0, 1, 1], [], []>} : vector<8x128xf32>, vector<128x128xf32>, vector<8x128xf32> -> vector<8x128xf32>
    %103 = arith.addf %101, %102 : vector<8x128xf32>
    %104 = math.tanh %103 : vector<8x128xf32>
    %105 = arith.index_cast %99 : i32 to index
    %c0_62 = arith.constant 0 : index
    %106 = vector.load %arg12[%105, %c0_62] : memref<64x128xf32, #tpu.memory_space<vmem>>, vector<8x128xf32>
    tpu.vector_store %arg12[%105, %c0_62], %104 {strides = array<i32>} : memref<64x128xf32, #tpu.memory_space<vmem>>, vector<8x128xf32>,
    %c2_i32_63 = arith.constant 2 : i32
    %c8_i32_64 = arith.constant 8 : i32
    %107 = arith.muli %c2_i32_63, %c8_i32_64 : i32
    %108 = tpu.assume_multiple %107, 8 : i32
    %109 = arith.index_cast %108 : i32 to index
    %c0_65 = arith.constant 0 : index
    %110 = vector.load %arg12[%109, %c0_65] : memref<64x128xf32, #tpu.memory_space<vmem>>, vector<8x128xf32>
    %cst_66 = arith.constant dense<0.000000e+00> : vector<8x128xf32>
    %111 = tpu.matmul %104, %88, %cst_66 {dimension_numbers = #tpu.dot_dimension_numbers<[1], [0], [0], [1], [0, 0, 1, 1], [], []>} : vector<8x128xf32>, vector<128x128xf32>, vector<8x128xf32> -> vector<8x128xf32>
    %112 = arith.addf %110, %111 : vector<8x128xf32>
    %113 = math.tanh %112 : vector<8x128xf32>
    %114 = arith.index_cast %108 : i32 to index
    %c0_67 = arith.constant 0 : index
    %115 = vector.load %arg12[%114, %c0_67] : memref<64x128xf32, #tpu.memory_space<vmem>>, vector<8x128xf32>
    tpu.vector_store %arg12[%114, %c0_67], %113 {strides = array<i32>} : memref<64x128xf32, #tpu.memory_space<vmem>>, vector<8x128xf32>,
    %c3_i32_68 = arith.constant 3 : i32
    %c8_i32_69 = arith.constant 8 : i32
    %116 = arith.muli %c3_i32_68, %c8_i32_69 : i32
    %117 = tpu.assume_multiple %116, 8 : i32
    %118 = arith.index_cast %117 : i32 to index
    %c0_70 = arith.constant 0 : index
    %119 = vector.load %arg12[%118, %c0_70] : memref<64x128xf32, #tpu.memory_space<vmem>>, vector<8x128xf32>
    %cst_71 = arith.constant dense<0.000000e+00> : vector<8x128xf32>
    %120 = tpu.matmul %113, %88, %cst_71 {dimension_numbers = #tpu.dot_dimension_numbers<[1], [0], [0], [1], [0, 0, 1, 1], [], []>} : vector<8x128xf32>, vector<128x128xf32>, vector<8x128xf32> -> vector<8x128xf32>
    %121 = arith.addf %119, %120 : vector<8x128xf32>
    %122 = math.tanh %121 : vector<8x128xf32>
    %123 = arith.index_cast %117 : i32 to index
    %c0_72 = arith.constant 0 : index
    %124 = vector.load %arg12[%123, %c0_72] : memref<64x128xf32, #tpu.memory_space<vmem>>, vector<8x128xf32>
    tpu.vector_store %arg12[%123, %c0_72], %122 {strides = array<i32>} : memref<64x128xf32, #tpu.memory_space<vmem>>, vector<8x128xf32>,
    %c4_i32_73 = arith.constant 4 : i32
    %c8_i32_74 = arith.constant 8 : i32
    %125 = arith.muli %c4_i32_73, %c8_i32_74 : i32
    %126 = tpu.assume_multiple %125, 8 : i32
    %127 = arith.index_cast %126 : i32 to index
    %c0_75 = arith.constant 0 : index
    %128 = vector.load %arg12[%127, %c0_75] : memref<64x128xf32, #tpu.memory_space<vmem>>, vector<8x128xf32>
    %cst_76 = arith.constant dense<0.000000e+00> : vector<8x128xf32>
    %129 = tpu.matmul %122, %88, %cst_76 {dimension_numbers = #tpu.dot_dimension_numbers<[1], [0], [0], [1], [0, 0, 1, 1], [], []>} : vector<8x128xf32>, vector<128x128xf32>, vector<8x128xf32> -> vector<8x128xf32>
    %130 = arith.addf %128, %129 : vector<8x128xf32>
    %131 = math.tanh %130 : vector<8x128xf32>
    %132 = arith.index_cast %126 : i32 to index
    %c0_77 = arith.constant 0 : index
    %133 = vector.load %arg12[%132, %c0_77] : memref<64x128xf32, #tpu.memory_space<vmem>>, vector<8x128xf32>
    tpu.vector_store %arg12[%132, %c0_77], %131 {strides = array<i32>} : memref<64x128xf32, #tpu.memory_space<vmem>>, vector<8x128xf32>,
    %c5_i32_78 = arith.constant 5 : i32
    %c8_i32_79 = arith.constant 8 : i32
    %134 = arith.muli %c5_i32_78, %c8_i32_79 : i32
    %135 = tpu.assume_multiple %134, 8 : i32
    %136 = arith.index_cast %135 : i32 to index
    %c0_80 = arith.constant 0 : index
    %137 = vector.load %arg12[%136, %c0_80] : memref<64x128xf32, #tpu.memory_space<vmem>>, vector<8x128xf32>
    %cst_81 = arith.constant dense<0.000000e+00> : vector<8x128xf32>
    %138 = tpu.matmul %131, %88, %cst_81 {dimension_numbers = #tpu.dot_dimension_numbers<[1], [0], [0], [1], [0, 0, 1, 1], [], []>} : vector<8x128xf32>, vector<128x128xf32>, vector<8x128xf32> -> vector<8x128xf32>
    %139 = arith.addf %137, %138 : vector<8x128xf32>
    %140 = math.tanh %139 : vector<8x128xf32>
    %141 = arith.index_cast %135 : i32 to index
    %c0_82 = arith.constant 0 : index
    %142 = vector.load %arg12[%141, %c0_82] : memref<64x128xf32, #tpu.memory_space<vmem>>, vector<8x128xf32>
    tpu.vector_store %arg12[%141, %c0_82], %140 {strides = array<i32>} : memref<64x128xf32, #tpu.memory_space<vmem>>, vector<8x128xf32>,
    %c6_i32_83 = arith.constant 6 : i32
    %c8_i32_84 = arith.constant 8 : i32
    %143 = arith.muli %c6_i32_83, %c8_i32_84 : i32
    %144 = tpu.assume_multiple %143, 8 : i32
    %145 = arith.index_cast %144 : i32 to index
    %c0_85 = arith.constant 0 : index
    %146 = vector.load %arg12[%145, %c0_85] : memref<64x128xf32, #tpu.memory_space<vmem>>, vector<8x128xf32>
    %cst_86 = arith.constant dense<0.000000e+00> : vector<8x128xf32>
    %147 = tpu.matmul %140, %88, %cst_86 {dimension_numbers = #tpu.dot_dimension_numbers<[1], [0], [0], [1], [0, 0, 1, 1], [], []>} : vector<8x128xf32>, vector<128x128xf32>, vector<8x128xf32> -> vector<8x128xf32>
    %148 = arith.addf %146, %147 : vector<8x128xf32>
    %149 = math.tanh %148 : vector<8x128xf32>
    %150 = arith.index_cast %144 : i32 to index
    %c0_87 = arith.constant 0 : index
    %151 = vector.load %arg12[%150, %c0_87] : memref<64x128xf32, #tpu.memory_space<vmem>>, vector<8x128xf32>
    tpu.vector_store %arg12[%150, %c0_87], %149 {strides = array<i32>} : memref<64x128xf32, #tpu.memory_space<vmem>>, vector<8x128xf32>,
    %c7_i32_88 = arith.constant 7 : i32
    %c8_i32_89 = arith.constant 8 : i32
    %152 = arith.muli %c7_i32_88, %c8_i32_89 : i32
    %153 = tpu.assume_multiple %152, 8 : i32
    %154 = arith.index_cast %153 : i32 to index
    %c0_90 = arith.constant 0 : index
    %155 = vector.load %arg12[%154, %c0_90] : memref<64x128xf32, #tpu.memory_space<vmem>>, vector<8x128xf32>
    %cst_91 = arith.constant dense<0.000000e+00> : vector<8x128xf32>
    %156 = tpu.matmul %149, %88, %cst_91 {dimension_numbers = #tpu.dot_dimension_numbers<[1], [0], [0], [1], [0, 0, 1, 1], [], []>} : vector<8x128xf32>, vector<128x128xf32>, vector<8x128xf32> -> vector<8x128xf32>
    %157 = arith.addf %155, %156 : vector<8x128xf32>
    %158 = math.tanh %157 : vector<8x128xf32>
    %159 = arith.index_cast %153 : i32 to index
    %c0_92 = arith.constant 0 : index
    %160 = vector.load %arg12[%159, %c0_92] : memref<64x128xf32, #tpu.memory_space<vmem>>, vector<8x128xf32>
    tpu.vector_store %arg12[%159, %c0_92], %158 {strides = array<i32>} : memref<64x128xf32, #tpu.memory_space<vmem>>, vector<8x128xf32>,
    %c8_i32_93 = arith.constant 8 : i32
    %c0_94 = arith.constant 0 : index
    %c0_95 = arith.constant 0 : index
    %161 = vector.load %arg12[%c0_94, %c0_95] : memref<64x128xf32, #tpu.memory_space<vmem>>, vector<64x128xf32>
    %c0_96 = arith.constant 0 : index
    %c0_97 = arith.constant 0 : index
    %162 = vector.load %arg8[%c0_96, %c0_97] : memref<128x128xf32, #tpu.memory_space<vmem>>, vector<128x128xf32>
    %cst_98 = arith.constant dense<0.000000e+00> : vector<64x128xf32>
    %163 = tpu.matmul %161, %162, %cst_98 {dimension_numbers = #tpu.dot_dimension_numbers<[1], [0], [0], [1], [0, 0, 1, 1], [], []>} : vector<64x128xf32>, vector<128x128xf32>, vector<64x128xf32> -> vector<64x128xf32>
    %c0_99 = arith.constant 0 : index
    %c0_100 = arith.constant 0 : index
    %164 = vector.load %arg9[%c0_99, %c0_100] : memref<1x128xf32, #tpu.memory_space<vmem>>, vector<1x128xf32>
    %165 = vector.broadcast %164 : vector<1x128xf32> to vector<64x128xf32>
    %166 = arith.addf %163, %165 : vector<64x128xf32>
    %167 = arith.negf %166 : vector<64x128xf32>
    %168 = math.exp %167 : vector<64x128xf32>
    %cst_101 = arith.constant 1.000000e+00 : f32
    %169 = vector.broadcast %cst_101 : f32 to vector<64x128xf32>
    %170 = arith.addf %169, %168 : vector<64x128xf32>
    %171 = arith.divf %169, %170 : vector<64x128xf32>
    %c0_102 = arith.constant 0 : index
    %c0_103 = arith.constant 0 : index
    %172 = vector.load %arg1[%c0_102, %c0_103] : memref<64x128xf32, #tpu.memory_space<vmem>>, vector<64x128xf32>
    %173 = arith.mulf %171, %172 : vector<64x128xf32>
    %c0_104 = arith.constant 0 : index
    %c0_105 = arith.constant 0 : index
    %174 = vector.load %arg10[%c0_104, %c0_105] : memref<64x128xf32, #tpu.memory_space<vmem>>, vector<64x128xf32>
    tpu.vector_store %arg10[%c0_104, %c0_105], %173 {strides = array<i32>} : memref<64x128xf32, #tpu.memory_space<vmem>>, vector<64x128xf32>,
    return
  }
}

</mosaic_0001>

<llo_original>
// kernel: tpu_custom_call.1
$region0: #{tpu_custom_call.1}
  #allocation0 [shape = 'u32[]', space=smem, size = 0x4, offset = 0x4, fixed_abs, tag = 'smem constant byte address 0x4 - core index']
  #allocation1 [shape = 'u32[72,128]{1,0:T(1,128)}', space=vmem, size = 0x9000, scoped, tag = 'internal scratch']
  #allocation2 [shape = 'f32[64,128]{1,0:T(8,128)}', space=vmem, size = 0x8000, scoped, tag = 'scratch operand']
  #allocation3 [shape = 'f32[64,128]{1,0:T(8,128)}', space=vmem, size = 0x8000, scoped, tag = 'scratch operand']
  %s0 = inlined_call_operand.hbm [shape: f32[64,128], index: 0, kind: input, shape index: {}]
  %s1 = inlined_call_operand.hbm [shape: f32[64,128], index: 1, kind: input, shape index: {}]
  %s2 = inlined_call_operand.hbm [shape: f32[128,128], index: 2, kind: input, shape index: {}]
  %s3 = inlined_call_operand.hbm [shape: f32[128,128], index: 3, kind: input, shape index: {}]
  %s4 = inlined_call_operand.vmem [shape: f32[1,128], index: 4, kind: input, shape index: {}]
  %s5 = inlined_call_operand.hbm [shape: f32[128,128], index: 5, kind: input, shape index: {}]
  %s6 = inlined_call_operand.hbm [shape: f32[128,128], index: 6, kind: input, shape index: {}]
  %s7 = inlined_call_operand.vmem [shape: f32[1,128], index: 7, kind: input, shape index: {}]
  %s8 = inlined_call_operand.hbm [shape: f32[128,128], index: 8, kind: input, shape index: {}]
  %s9 = inlined_call_operand.vmem [shape: f32[1,128], index: 9, kind: input, shape index: {}]
  %s10 = inlined_call_operand.hbm [shape: f32[64,128], index: 10, kind: output, shape index: {}]
  %s11 = sld [smem:[#allocation0]]
  $region78: #{tpu_custom_call.1} parent=0
    _
  %s13 = ssub.s32 1, %s11
  %s14 = scalar_select 0, %s13, %s11
  $region1: #{tpu_custom_call.1} parent=0
    #allocation4 [shape = 'u8[32768]{0}', space=vmem, size = 0x8000, scoped, tag = 'input window, operand 0, single buffered']
    #allocation5 [shape = 's32[1]{0}', space=sflag, size = 0x4, scoped, tag = 'scoped memory for tpu_custom_call.1']
    #allocation6 [shape = 's32[1]{0}', space=sflag, size = 0x4, scoped, tag = 'scoped memory for tpu_custom_call.1']
    #allocation7 [shape = 'u8[32768]{0}', space=vmem, size = 0x8000, scoped, tag = 'input window, operand 1, single buffered']
    #allocation8 [shape = 's32[1]{0}', space=sflag, size = 0x4, scoped, tag = 'scoped memory for tpu_custom_call.1']
    #allocation9 [shape = 'u8[65536]{0}', space=vmem, size = 0x10000, scoped, tag = 'input window, operand 2, single buffered']
    #allocation10 [shape = 'u8[65536]{0}', space=vmem, size = 0x10000, scoped, tag = 'input window, operand 3, single buffered']
    #allocation11 [shape = 's32[1]{0}', space=sflag, size = 0x4, scoped, tag = 'scoped memory for tpu_custom_call.1']
    #allocation12 [shape = 'u8[65536]{0}', space=vmem, size = 0x10000, scoped, tag = 'input window, operand 5, single buffered']
    #allocation13 [shape = 'u8[65536]{0}', space=vmem, size = 0x10000, scoped, tag = 'input window, operand 6, single buffered']
    #allocation14 [shape = 's32[1]{0}', space=sflag, size = 0x4, scoped, tag = 'scoped memory for tpu_custom_call.1']
    #allocation15 [shape = 'u8[65536]{0}', space=vmem, size = 0x10000, scoped, tag = 'input window, operand 8, single buffered']
    #allocation16 [shape = 'u8[32768]{0}', space=vmem, size = 0x8000, scoped, tag = 'output window, operand 0, single buffered']
    %15 = vsyncpa [#allocation5], 0
    %16 = vsyncpa [#allocation8], 0
    %17 = vsyncpa [#allocation11], 0
    %18 = vsyncpa [#allocation14], 0
    %19 = vsyncpa [#allocation6], 0
    // Predicated region
    $region2: #{tpu_custom_call.1} parent=1 // pred_check
      _
    $region3: #{tpu_custom_call.1} parent=1 // pred_check_branch
      %21 = sbr.rel (0) target = $region5
    $region4: #{tpu_custom_call.1} parent=1 // pred_region
      %23 = vsyncadd [#allocation5], 0
      %s24 = sshll.u32 %s0, 4
      %s25 = int_to_ptr.hbm [resolvable:$true] %s24
      %s26 = sshll.u32 [#allocation4], 4
      %s27 = int_to_ptr.vmem [resolvable:$true] %s26
      %32 = dma.hbm_to_vmem [thread:$0]  %s25, 1024, %s27, [#allocation5], 128, 128, 8
    $region5: #{tpu_custom_call.1} parent=1 // pred_fallthru
      _
    // Predicated region
    $region6: #{tpu_custom_call.1} parent=1 // pred_check
      _
    $region7: #{tpu_custom_call.1} parent=1 // pred_check_branch
      %34 = sbr.rel (0) target = $region9
    $region8: #{tpu_custom_call.1} parent=1 // pred_region
      %36 = vsyncadd [#allocation8], 0
      %s37 = sshll.u32 %s1, 4
      %s38 = int_to_ptr.hbm [resolvable:$true] %s37
      %s39 = sshll.u32 [#allocation7], 4
      %s40 = int_to_ptr.vmem [resolvable:$true] %s39
      %45 = dma.hbm_to_vmem [thread:$0]  %s38, 1024, %s40, [#allocation8], 128, 128, 8
    $region9: #{tpu_custom_call.1} parent=1 // pred_fallthru
      _
    // Predicated region
    $region10: #{tpu_custom_call.1} parent=1 // pred_check
      _
    $region11: #{tpu_custom_call.1} parent=1 // pred_check_branch
      %47 = sbr.rel (0) target = $region13
    $region12: #{tpu_custom_call.1} parent=1 // pred_region
      %49 = vsyncadd [#allocation8], 0
      %s50 = sshll.u32 %s2, 4
      %s51 = int_to_ptr.hbm [resolvable:$true] %s50
      %s52 = sshll.u32 [#allocation9], 4
      %s53 = int_to_ptr.vmem [resolvable:$true] %s52
      %58 = dma.hbm_to_vmem [thread:$0]  %s51, 2048, %s53, [#allocation8], 128, 128, 8
    $region13: #{tpu_custom_call.1} parent=1 // pred_fallthru
      _
    // Predicated region
    $region14: #{tpu_custom_call.1} parent=1 // pred_check
      _
    $region15: #{tpu_custom_call.1} parent=1 // pred_check_branch
      %60 = sbr.rel (0) target = $region17
    $region16: #{tpu_custom_call.1} parent=1 // pred_region
      %62 = vsyncadd [#allocation11], 0
      %s63 = sshll.u32 %s3, 4
      %s64 = int_to_ptr.hbm [resolvable:$true] %s63
      %s65 = sshll.u32 [#allocation10], 4
      %s66 = int_to_ptr.vmem [resolvable:$true] %s65
      %71 = dma.hbm_to_vmem [thread:$0]  %s64, 2048, %s66, [#allocation11], 128, 128, 8
    $region17: #{tpu_custom_call.1} parent=1 // pred_fallthru
      _
    // Predicated region
    $region18: #{tpu_custom_call.1} parent=1 // pred_check
      _
    $region19: #{tpu_custom_call.1} parent=1 // pred_check_branch
      %73 = sbr.rel (0) target = $region21
    $region20: #{tpu_custom_call.1} parent=1 // pred_region
      _
    $region21: #{tpu_custom_call.1} parent=1 // pred_fallthru
      _
    // Predicated region
    $region22: #{tpu_custom_call.1} parent=1 // pred_check
      _
    $region23: #{tpu_custom_call.1} parent=1 // pred_check_branch
      %75 = sbr.rel (0) target = $region25
    $region24: #{tpu_custom_call.1} parent=1 // pred_region
      %77 = vsyncadd [#allocation11], 0
      %s78 = sshll.u32 %s5, 4
      %s79 = int_to_ptr.hbm [resolvable:$true] %s78
      %s80 = sshll.u32 [#allocation12], 4
      %s81 = int_to_ptr.vmem [resolvable:$true] %s80
      %86 = dma.hbm_to_vmem [thread:$0]  %s79, 2048, %s81, [#allocation11], 128, 128, 8
    $region25: #{tpu_custom_call.1} parent=1 // pred_fallthru
      _
    // Predicated region
    $region26: #{tpu_custom_call.1} parent=1 // pred_check
      _
    $region27: #{tpu_custom_call.1} parent=1 // pred_check_branch
      %88 = sbr.rel (0) target = $region29
    $region28: #{tpu_custom_call.1} parent=1 // pred_region
      %90 = vsyncadd [#allocation14], 0
      %s91 = sshll.u32 %s6, 4
      %s92 = int_to_ptr.hbm [resolvable:$true] %s91
      %s93 = sshll.u32 [#allocation13], 4
      %s94 = int_to_ptr.vmem [resolvable:$true] %s93
      %99 = dma.hbm_to_vmem [thread:$0]  %s92, 2048, %s94, [#allocation14], 128, 128, 8
    $region29: #{tpu_custom_call.1} parent=1 // pred_fallthru
      _
    // Predicated region
    $region30: #{tpu_custom_call.1} parent=1 // pred_check
      _
    $region31: #{tpu_custom_call.1} parent=1 // pred_check_branch
      %101 = sbr.rel (0) target = $region33
    $region32: #{tpu_custom_call.1} parent=1 // pred_region
      _
    $region33: #{tpu_custom_call.1} parent=1 // pred_fallthru
      _
    // Predicated region
    $region34: #{tpu_custom_call.1} parent=1 // pred_check
      _
    $region35: #{tpu_custom_call.1} parent=1 // pred_check_branch
      %103 = sbr.rel (0) target = $region37
    $region36: #{tpu_custom_call.1} parent=1 // pred_region
      %105 = vsyncadd [#allocation14], 0
      %s106 = sshll.u32 %s8, 4
      %s107 = int_to_ptr.hbm [resolvable:$true] %s106
      %s108 = sshll.u32 [#allocation15], 4
      %s109 = int_to_ptr.vmem [resolvable:$true] %s108
      %114 = dma.hbm_to_vmem [thread:$0]  %s107, 2048, %s109, [#allocation14], 128, 128, 8
    $region37: #{tpu_custom_call.1} parent=1 // pred_fallthru
      _
    // Predicated region
    $region38: #{tpu_custom_call.1} parent=1 // pred_check
      _
    $region39: #{tpu_custom_call.1} parent=1 // pred_check_branch
      %116 = sbr.rel (0) target = $region41
    $region40: #{tpu_custom_call.1} parent=1 // pred_region
      _
    $region41: #{tpu_custom_call.1} parent=1 // pred_fallthru
      _
    // Predicated region
    $region42: #{tpu_custom_call.1} parent=1 // pred_check
      _
    $region43: #{tpu_custom_call.1} parent=1 // pred_check_branch
      %118 = sbr.rel (0) target = $region45
    $region44: #{tpu_custom_call.1} parent=1 // pred_region
      %120 = dma.done [#allocation5], 1024
    $region45: #{tpu_custom_call.1} parent=1 // pred_fallthru
      _
    // Predicated region
    $region46: #{tpu_custom_call.1} parent=1 // pred_check
      _
    $region47: #{tpu_custom_call.1} parent=1 // pred_check_branch
      %122 = sbr.rel (0) target = $region49
    $region48: #{tpu_custom_call.1} parent=1 // pred_region
      %124 = dma.done [#allocation8], 1024
    $region49: #{tpu_custom_call.1} parent=1 // pred_fallthru
      _
    // Predicated region
    $region50: #{tpu_custom_call.1} parent=1 // pred_check
      _
    $region51: #{tpu_custom_call.1} parent=1 // pred_check_branch
      %126 = sbr.rel (0) target = $region53
    $region52: #{tpu_custom_call.1} parent=1 // pred_region
      %128 = dma.done [#allocation8], 2048
    $region53: #{tpu_custom_call.1} parent=1 // pred_fallthru
      _
    // Predicated region
    $region54: #{tpu_custom_call.1} parent=1 // pred_check
      _
    $region55: #{tpu_custom_call.1} parent=1 // pred_check_branch
      %130 = sbr.rel (0) target = $region57
    $region56: #{tpu_custom_call.1} parent=1 // pred_region
      %132 = dma.done [#allocation11], 2048
    $region57: #{tpu_custom_call.1} parent=1 // pred_fallthru
      _
    // Predicated region
    $region58: #{tpu_custom_call.1} parent=1 // pred_check
      _
    $region59: #{tpu_custom_call.1} parent=1 // pred_check_branch
      %134 = sbr.rel (0) target = $region61
    $region60: #{tpu_custom_call.1} parent=1 // pred_region
      %136 = dma.done [#allocation11], 2048
    $region61: #{tpu_custom_call.1} parent=1 // pred_fallthru
      _
    // Predicated region
    $region62: #{tpu_custom_call.1} parent=1 // pred_check
      _
    $region63: #{tpu_custom_call.1} parent=1 // pred_check_branch
      %138 = sbr.rel (0) target = $region65
    $region64: #{tpu_custom_call.1} parent=1 // pred_region
      %140 = dma.done [#allocation14], 2048
    $region65: #{tpu_custom_call.1} parent=1 // pred_fallthru
      _
    // Predicated region
    $region66: #{tpu_custom_call.1} parent=1 // pred_check
      _
    $region67: #{tpu_custom_call.1} parent=1 // pred_check_branch
      %142 = sbr.rel (0) target = $region69
    $region68: #{tpu_custom_call.1} parent=1 // pred_region
      %144 = dma.done [#allocation14], 2048
    $region69: #{tpu_custom_call.1} parent=1 // pred_fallthru
      _
    %v145 = vld [vmem:[#allocation4] sm:$0xff]
    %v146 = vld [vmem:[#allocation4 + $0x8] sm:$0xff]
    %v147 = vld [vmem:[#allocation4 + $0x10] sm:$0xff]
    %v148 = vld [vmem:[#allocation4 + $0x18] sm:$0xff]
    %v149 = vld [vmem:[#allocation4 + $0x20] sm:$0xff]
    %v150 = vld [vmem:[#allocation4 + $0x28] sm:$0xff]
    %v151 = vld [vmem:[#allocation4 + $0x30] sm:$0xff]
    %v152 = vld [vmem:[#allocation4 + $0x38] sm:$0xff]
    %v153 = vld [vmem:[#allocation9] sm:$0xff]
    %v154 = vld [vmem:[#allocation9 + $0x8] sm:$0xff]
    %v155 = vld [vmem:[#allocation9 + $0x10] sm:$0xff]
    %v156 = vld [vmem:[#allocation9 + $0x18] sm:$0xff]
    %v157 = vld [vmem:[#allocation9 + $0x20] sm:$0xff]
    %v158 = vld [vmem:[#allocation9 + $0x28] sm:$0xff]
    %v159 = vld [vmem:[#allocation9 + $0x30] sm:$0xff]
    %v160 = vld [vmem:[#allocation9 + $0x38] sm:$0xff]
    %v161 = vld [vmem:[#allocation9 + $0x40] sm:$0xff]
    %v162 = vld [vmem:[#allocation9 + $0x48] sm:$0xff]
    %v163 = vld [vmem:[#allocation9 + $0x50] sm:$0xff]
    %v164 = vld [vmem:[#allocation9 + $0x58] sm:$0xff]
    %v165 = vld [vmem:[#allocation9 + $0x60] sm:$0xff]
    %v166 = vld [vmem:[#allocation9 + $0x68] sm:$0xff]
    %v167 = vld [vmem:[#allocation9 + $0x70] sm:$0xff]
    %v168 = vld [vmem:[#allocation9 + $0x78] sm:$0xff]
    %v169 = vld [vmem:[%s4] sm:$0x1]
    %v171 = vperm.slane %v169, 0
    %173 = vmatpush.msra.mxu0 %v168
    %174 = vmatpush.msra.mxu0 %v167
    %175 = vmatpush.msra.mxu0 %v166
    %176 = vmatpush.msra.mxu0 %v165
    %177 = vmatpush.msra.mxu0 %v164
    %178 = vmatpush.msra.mxu0 %v163
    %179 = vmatpush.msra.mxu0 %v162
    %180 = vmatpush.msra.mxu0 %v161
    %181 = vmatpush.msra.mxu0 %v160
    %182 = vmatpush.msra.mxu0 %v159
    %183 = vmatpush.msra.mxu0 %v158
    %184 = vmatpush.msra.mxu0 %v157
    %185 = vmatpush.msra.mxu0 %v156
    %186 = vmatpush.msra.mxu0 %v155
    %187 = vmatpush.msra.mxu0 %v154
    %188 = vmatpush.msra.mxu0 %v153
    %189 = vmatmul.f32.gmra.mxu0 %v145
    %v190 = vpop.f32.mrf.mxu0
    %v191 = vadd.f32 %v171, %v190
    %192 = vmatmul.f32.gmra.mxu0 %v146
    %v193 = vpop.f32.mrf.mxu0
    %v194 = vadd.f32 %v171, %v193
    %195 = vmatmul.f32.gmra.mxu0 %v147
    %v196 = vpop.f32.mrf.mxu0
    %v197 = vadd.f32 %v171, %v196
    %198 = vmatmul.f32.gmra.mxu0 %v148
    %v199 = vpop.f32.mrf.mxu0
    %v200 = vadd.f32 %v171, %v199
    %201 = vmatmul.f32.gmra.mxu0 %v149
    %v202 = vpop.f32.mrf.mxu0
    %v203 = vadd.f32 %v171, %v202
    %204 = vmatmul.f32.gmra.mxu0 %v150
    %v205 = vpop.f32.mrf.mxu0
    %v206 = vadd.f32 %v171, %v205
    %207 = vmatmul.f32.gmra.mxu0 %v151
    %v208 = vpop.f32.mrf.mxu0
    %v209 = vadd.f32 %v171, %v208
    %210 = vmatmul.f32.gmra.mxu0 %v152
    %v211 = vpop.f32.mrf.mxu0
    %v212 = vadd.f32 %v171, %v211
    %213 = vdwg.mxu0
    %214 = vst [vmem:[#allocation2] sm:$0xff] %v191
    %215 = vst [vmem:[#allocation2 + $0x8] sm:$0xff] %v194
    %216 = vst [vmem:[#allocation2 + $0x10] sm:$0xff] %v197
    %217 = vst [vmem:[#allocation2 + $0x18] sm:$0xff] %v200
    %218 = vst [vmem:[#allocation2 + $0x20] sm:$0xff] %v203
    %219 = vst [vmem:[#allocation2 + $0x28] sm:$0xff] %v206
    %220 = vst [vmem:[#allocation2 + $0x30] sm:$0xff] %v209
    %221 = vst [vmem:[#allocation2 + $0x38] sm:$0xff] %v212
    %v222 = vld [vmem:[#allocation10] sm:$0xff]
    %v223 = vld [vmem:[#allocation10 + $0x8] sm:$0xff]
    %v224 = vld [vmem:[#allocation10 + $0x10] sm:$0xff]
    %v225 = vld [vmem:[#allocation10 + $0x18] sm:$0xff]
    %v226 = vld [vmem:[#allocation10 + $0x20] sm:$0xff]
    %v227 = vld [vmem:[#allocation10 + $0x28] sm:$0xff]
    %v228 = vld [vmem:[#allocation10 + $0x30] sm:$0xff]
    %v229 = vld [vmem:[#allocation10 + $0x38] sm:$0xff]
    %v230 = vld [vmem:[#allocation10 + $0x40] sm:$0xff]
    %v231 = vld [vmem:[#allocation10 + $0x48] sm:$0xff]
    %v232 = vld [vmem:[#allocation10 + $0x50] sm:$0xff]
    %v233 = vld [vmem:[#allocation10 + $0x58] sm:$0xff]
    %v234 = vld [vmem:[#allocation10 + $0x60] sm:$0xff]
    %v235 = vld [vmem:[#allocation10 + $0x68] sm:$0xff]
    %v236 = vld [vmem:[#allocation10 + $0x70] sm:$0xff]
    %v237 = vld [vmem:[#allocation10 + $0x78] sm:$0xff]
    %v238 = vld [vmem:[#allocation2] sm:$0xff]
    %239 = vmatpush.msra.mxu0 %v237
    %240 = vmatpush.msra.mxu0 %v236
    %241 = vmatpush.msra.mxu0 %v235
    %242 = vmatpush.msra.mxu0 %v234
    %243 = vmatpush.msra.mxu0 %v233
    %244 = vmatpush.msra.mxu0 %v232
    %245 = vmatpush.msra.mxu0 %v231
    %246 = vmatpush.msra.mxu0 %v230
    %247 = vmatpush.msra.mxu0 %v229
    %248 = vmatpush.msra.mxu0 %v228
    %249 = vmatpush.msra.mxu0 %v227
    %250 = vmatpush.msra.mxu0 %v226
    %251 = vmatpush.msra.mxu0 %v225
    %252 = vmatpush.msra.mxu0 %v224
    %253 = vmatpush.msra.mxu0 %v223
    %254 = vmatpush.msra.mxu0 %v222
    %255 = vmatmul.f32.gmra.mxu0 0.0
    %v256 = vpop.f32.mrf.mxu0
    %v257 = vadd.f32 0.0, %v256
    %258 = vdwg.mxu0
    %v259 = vadd.f32 %v238, %v257
    %v260 = vtanh.pop %v259
    %261 = vst [vmem:[#allocation2] sm:$0xff] %v260
    %s262 = scalar_lea.vmem [#allocation2], 8
    %v263 = vld [vmem:[%s262] sm:$0xff]
    %264 = vmatpush.msra.mxu0 %v237
    %265 = vmatpush.msra.mxu0 %v236
    %266 = vmatpush.msra.mxu0 %v235
    %267 = vmatpush.msra.mxu0 %v234
    %268 = vmatpush.msra.mxu0 %v233
    %269 = vmatpush.msra.mxu0 %v232
    %270 = vmatpush.msra.mxu0 %v231
    %271 = vmatpush.msra.mxu0 %v230
    %272 = vmatpush.msra.mxu0 %v229
    %273 = vmatpush.msra.mxu0 %v228
    %274 = vmatpush.msra.mxu0 %v227
    %275 = vmatpush.msra.mxu0 %v226
    %276 = vmatpush.msra.mxu0 %v225
    %277 = vmatpush.msra.mxu0 %v224
    %278 = vmatpush.msra.mxu0 %v223
    %279 = vmatpush.msra.mxu0 %v222
    %280 = vmatmul.f32.gmra.mxu0 %v260
    %v281 = vpop.f32.mrf.mxu0
    %v282 = vadd.f32 0.0, %v281
    %283 = vdwg.mxu0
    %v284 = vadd.f32 %v263, %v282
    %v285 = vtanh.pop %v284
    %286 = vst [vmem:[%s262] sm:$0xff] %v285
    %s287 = scalar_lea.vmem [#allocation2], 16
    %v288 = vld [vmem:[%s287] sm:$0xff]
    %289 = vmatpush.msra.mxu0 %v237
    %290 = vmatpush.msra.mxu0 %v236
    %291 = vmatpush.msra.mxu0 %v235
    %292 = vmatpush.msra.mxu0 %v234
    %293 = vmatpush.msra.mxu0 %v233
    %294 = vmatpush.msra.mxu0 %v232
    %295 = vmatpush.msra.mxu0 %v231
    %296 = vmatpush.msra.mxu0 %v230
    %297 = vmatpush.msra.mxu0 %v229
    %298 = vmatpush.msra.mxu0 %v228
    %299 = vmatpush.msra.mxu0 %v227
    %300 = vmatpush.msra.mxu0 %v226
    %301 = vmatpush.msra.mxu0 %v225
    %302 = vmatpush.msra.mxu0 %v224
    %303 = vmatpush.msra.mxu0 %v223
    %304 = vmatpush.msra.mxu0 %v222
    %305 = vmatmul.f32.gmra.mxu0 %v285
    %v306 = vpop.f32.mrf.mxu0
    %v307 = vadd.f32 0.0, %v306
    %308 = vdwg.mxu0
    %v309 = vadd.f32 %v288, %v307
    %v310 = vtanh.pop %v309
    %311 = vst [vmem:[%s287] sm:$0xff] %v310
    %s312 = scalar_lea.vmem [#allocation2], 24
    %v313 = vld [vmem:[%s312] sm:$0xff]
    %314 = vmatpush.msra.mxu0 %v237
    %315 = vmatpush.msra.mxu0 %v236
    %316 = vmatpush.msra.mxu0 %v235
    %317 = vmatpush.msra.mxu0 %v234
    %318 = vmatpush.msra.mxu0 %v233
    %319 = vmatpush.msra.mxu0 %v232
    %320 = vmatpush.msra.mxu0 %v231
    %321 = vmatpush.msra.mxu0 %v230
    %322 = vmatpush.msra.mxu0 %v229
    %323 = vmatpush.msra.mxu0 %v228
    %324 = vmatpush.msra.mxu0 %v227
    %325 = vmatpush.msra.mxu0 %v226
    %326 = vmatpush.msra.mxu0 %v225
    %327 = vmatpush.msra.mxu0 %v224
    %328 = vmatpush.msra.mxu0 %v223
    %329 = vmatpush.msra.mxu0 %v222
    %330 = vmatmul.f32.gmra.mxu0 %v310
    %v331 = vpop.f32.mrf.mxu0
    %v332 = vadd.f32 0.0, %v331
    %333 = vdwg.mxu0
    %v334 = vadd.f32 %v313, %v332
    %v335 = vtanh.pop %v334
    %336 = vst [vmem:[%s312] sm:$0xff] %v335
    %s337 = scalar_lea.vmem [#allocation2], 32
    %v338 = vld [vmem:[%s337] sm:$0xff]
    %339 = vmatpush.msra.mxu0 %v237
    %340 = vmatpush.msra.mxu0 %v236
    %341 = vmatpush.msra.mxu0 %v235
    %342 = vmatpush.msra.mxu0 %v234
    %343 = vmatpush.msra.mxu0 %v233
    %344 = vmatpush.msra.mxu0 %v232
    %345 = vmatpush.msra.mxu0 %v231
    %346 = vmatpush.msra.mxu0 %v230
    %347 = vmatpush.msra.mxu0 %v229
    %348 = vmatpush.msra.mxu0 %v228
    %349 = vmatpush.msra.mxu0 %v227
    %350 = vmatpush.msra.mxu0 %v226
    %351 = vmatpush.msra.mxu0 %v225
    %352 = vmatpush.msra.mxu0 %v224
    %353 = vmatpush.msra.mxu0 %v223
    %354 = vmatpush.msra.mxu0 %v222
    %355 = vmatmul.f32.gmra.mxu0 %v335
    %v356 = vpop.f32.mrf.mxu0
    %v357 = vadd.f32 0.0, %v356
    %358 = vdwg.mxu0
    %v359 = vadd.f32 %v338, %v357
    %v360 = vtanh.pop %v359
    %361 = vst [vmem:[%s337] sm:$0xff] %v360
    %s362 = scalar_lea.vmem [#allocation2], 40
    %v363 = vld [vmem:[%s362] sm:$0xff]
    %364 = vmatpush.msra.mxu0 %v237
    %365 = vmatpush.msra.mxu0 %v236
    %366 = vmatpush.msra.mxu0 %v235
    %367 = vmatpush.msra.mxu0 %v234
    %368 = vmatpush.msra.mxu0 %v233
    %369 = vmatpush.msra.mxu0 %v232
    %370 = vmatpush.msra.mxu0 %v231
    %371 = vmatpush.msra.mxu0 %v230
    %372 = vmatpush.msra.mxu0 %v229
    %373 = vmatpush.msra.mxu0 %v228
    %374 = vmatpush.msra.mxu0 %v227
    %375 = vmatpush.msra.mxu0 %v226
    %376 = vmatpush.msra.mxu0 %v225
    %377 = vmatpush.msra.mxu0 %v224
    %378 = vmatpush.msra.mxu0 %v223
    %379 = vmatpush.msra.mxu0 %v222
    %380 = vmatmul.f32.gmra.mxu0 %v360
    %v381 = vpop.f32.mrf.mxu0
    %v382 = vadd.f32 0.0, %v381
    %383 = vdwg.mxu0
    %v384 = vadd.f32 %v363, %v382
    %v385 = vtanh.pop %v384
    %386 = vst [vmem:[%s362] sm:$0xff] %v385
    %s387 = scalar_lea.vmem [#allocation2], 48
    %v388 = vld [vmem:[%s387] sm:$0xff]
    %389 = vmatpush.msra.mxu0 %v237
    %390 = vmatpush.msra.mxu0 %v236
    %391 = vmatpush.msra.mxu0 %v235
    %392 = vmatpush.msra.mxu0 %v234
    %393 = vmatpush.msra.mxu0 %v233
    %394 = vmatpush.msra.mxu0 %v232
    %395 = vmatpush.msra.mxu0 %v231
    %396 = vmatpush.msra.mxu0 %v230
    %397 = vmatpush.msra.mxu0 %v229
    %398 = vmatpush.msra.mxu0 %v228
    %399 = vmatpush.msra.mxu0 %v227
    %400 = vmatpush.msra.mxu0 %v226
    %401 = vmatpush.msra.mxu0 %v225
    %402 = vmatpush.msra.mxu0 %v224
    %403 = vmatpush.msra.mxu0 %v223
    %404 = vmatpush.msra.mxu0 %v222
    %405 = vmatmul.f32.gmra.mxu0 %v385
    %v406 = vpop.f32.mrf.mxu0
    %v407 = vadd.f32 0.0, %v406
    %408 = vdwg.mxu0
    %v409 = vadd.f32 %v388, %v407
    %v410 = vtanh.pop %v409
    %411 = vst [vmem:[%s387] sm:$0xff] %v410
    %s412 = scalar_lea.vmem [#allocation2], 56
    %v413 = vld [vmem:[%s412] sm:$0xff]
    %414 = vmatpush.msra.mxu0 %v237
    %415 = vmatpush.msra.mxu0 %v236
    %416 = vmatpush.msra.mxu0 %v235
    %417 = vmatpush.msra.mxu0 %v234
    %418 = vmatpush.msra.mxu0 %v233
    %419 = vmatpush.msra.mxu0 %v232
    %420 = vmatpush.msra.mxu0 %v231
    %421 = vmatpush.msra.mxu0 %v230
    %422 = vmatpush.msra.mxu0 %v229
    %423 = vmatpush.msra.mxu0 %v228
    %424 = vmatpush.msra.mxu0 %v227
    %425 = vmatpush.msra.mxu0 %v226
    %426 = vmatpush.msra.mxu0 %v225
    %427 = vmatpush.msra.mxu0 %v224
    %428 = vmatpush.msra.mxu0 %v223
    %429 = vmatpush.msra.mxu0 %v222
    %430 = vmatmul.f32.gmra.mxu0 %v410
    %v431 = vpop.f32.mrf.mxu0
    %v432 = vadd.f32 0.0, %v431
    %433 = vdwg.mxu0
    %v434 = vadd.f32 %v413, %v432
    %v435 = vtanh.pop %v434
    %436 = vst [vmem:[%s412] sm:$0xff] %v435
    %v437 = vld [vmem:[#allocation2] sm:$0xff]
    %v438 = vld [vmem:[#allocation2 + $0x8] sm:$0xff]
    %v439 = vld [vmem:[#allocation2 + $0x10] sm:$0xff]
    %v440 = vld [vmem:[#allocation2 + $0x18] sm:$0xff]
    %v441 = vld [vmem:[#allocation2 + $0x20] sm:$0xff]
    %v442 = vld [vmem:[#allocation2 + $0x28] sm:$0xff]
    %v443 = vld [vmem:[#allocation2 + $0x30] sm:$0xff]
    %v444 = vld [vmem:[#allocation2 + $0x38] sm:$0xff]
    %v445 = vld [vmem:[#allocation12] sm:$0xff]
    %v446 = vld [vmem:[#allocation12 + $0x8] sm:$0xff]
    %v447 = vld [vmem:[#allocation12 + $0x10] sm:$0xff]
    %v448 = vld [vmem:[#allocation12 + $0x18] sm:$0xff]
    %v449 = vld [vmem:[#allocation12 + $0x20] sm:$0xff]
    %v450 = vld [vmem:[#allocation12 + $0x28] sm:$0xff]
    %v451 = vld [vmem:[#allocation12 + $0x30] sm:$0xff]
    %v452 = vld [vmem:[#allocation12 + $0x38] sm:$0xff]
    %v453 = vld [vmem:[#allocation12 + $0x40] sm:$0xff]
    %v454 = vld [vmem:[#allocation12 + $0x48] sm:$0xff]
    %v455 = vld [vmem:[#allocation12 + $0x50] sm:$0xff]
    %v456 = vld [vmem:[#allocation12 + $0x58] sm:$0xff]
    %v457 = vld [vmem:[#allocation12 + $0x60] sm:$0xff]
    %v458 = vld [vmem:[#allocation12 + $0x68] sm:$0xff]
    %v459 = vld [vmem:[#allocation12 + $0x70] sm:$0xff]
    %v460 = vld [vmem:[#allocation12 + $0x78] sm:$0xff]
    %v461 = vld [vmem:[%s7] sm:$0x1]
    %v463 = vperm.slane %v461, 0
    %465 = vmatpush.msra.mxu0 %v460
    %466 = vmatpush.msra.mxu0 %v459
    %467 = vmatpush.msra.mxu0 %v458
    %468 = vmatpush.msra.mxu0 %v457
    %469 = vmatpush.msra.mxu0 %v456
    %470 = vmatpush.msra.mxu0 %v455
    %471 = vmatpush.msra.mxu0 %v454
    %472 = vmatpush.msra.mxu0 %v453
    %473 = vmatpush.msra.mxu0 %v452
    %474 = vmatpush.msra.mxu0 %v451
    %475 = vmatpush.msra.mxu0 %v450
    %476 = vmatpush.msra.mxu0 %v449
    %477 = vmatpush.msra.mxu0 %v448
    %478 = vmatpush.msra.mxu0 %v447
    %479 = vmatpush.msra.mxu0 %v446
    %480 = vmatpush.msra.mxu0 %v445
    %481 = vmatmul.f32.gmra.mxu0 %v437
    %v482 = vpop.f32.mrf.mxu0
    %v483 = vadd.f32 %v463, %v482
    %484 = vmatmul.f32.gmra.mxu0 %v438
    %v485 = vpop.f32.mrf.mxu0
    %v486 = vadd.f32 %v463, %v485
    %487 = vmatmul.f32.gmra.mxu0 %v439
    %v488 = vpop.f32.mrf.mxu0
    %v489 = vadd.f32 %v463, %v488
    %490 = vmatmul.f32.gmra.mxu0 %v440
    %v491 = vpop.f32.mrf.mxu0
    %v492 = vadd.f32 %v463, %v491
    %493 = vmatmul.f32.gmra.mxu0 %v441
    %v494 = vpop.f32.mrf.mxu0
    %v495 = vadd.f32 %v463, %v494
    %496 = vmatmul.f32.gmra.mxu0 %v442
    %v497 = vpop.f32.mrf.mxu0
    %v498 = vadd.f32 %v463, %v497
    %499 = vmatmul.f32.gmra.mxu0 %v443
    %v500 = vpop.f32.mrf.mxu0
    %v501 = vadd.f32 %v463, %v500
    %502 = vmatmul.f32.gmra.mxu0 %v444
    %v503 = vpop.f32.mrf.mxu0
    %v504 = vadd.f32 %v463, %v503
    %505 = vdwg.mxu0
    %506 = vst [vmem:[#allocation3] sm:$0xff] %v483
    %507 = vst [vmem:[#allocation3 + $0x8] sm:$0xff] %v486
    %508 = vst [vmem:[#allocation3 + $0x10] sm:$0xff] %v489
    %509 = vst [vmem:[#allocation3 + $0x18] sm:$0xff] %v492
    %510 = vst [vmem:[#allocation3 + $0x20] sm:$0xff] %v495
    %511 = vst [vmem:[#allocation3 + $0x28] sm:$0xff] %v498
    %512 = vst [vmem:[#allocation3 + $0x30] sm:$0xff] %v501
    %513 = vst [vmem:[#allocation3 + $0x38] sm:$0xff] %v504
    %v514 = vld [vmem:[#allocation13] sm:$0xff]
    %v515 = vld [vmem:[#allocation13 + $0x8] sm:$0xff]
    %v516 = vld [vmem:[#allocation13 + $0x10] sm:$0xff]
    %v517 = vld [vmem:[#allocation13 + $0x18] sm:$0xff]
    %v518 = vld [vmem:[#allocation13 + $0x20] sm:$0xff]
    %v519 = vld [vmem:[#allocation13 + $0x28] sm:$0xff]
    %v520 = vld [vmem:[#allocation13 + $0x30] sm:$0xff]
    %v521 = vld [vmem:[#allocation13 + $0x38] sm:$0xff]
    %v522 = vld [vmem:[#allocation13 + $0x40] sm:$0xff]
    %v523 = vld [vmem:[#allocation13 + $0x48] sm:$0xff]
    %v524 = vld [vmem:[#allocation13 + $0x50] sm:$0xff]
    %v525 = vld [vmem:[#allocation13 + $0x58] sm:$0xff]
    %v526 = vld [vmem:[#allocation13 + $0x60] sm:$0xff]
    %v527 = vld [vmem:[#allocation13 + $0x68] sm:$0xff]
    %v528 = vld [vmem:[#allocation13 + $0x70] sm:$0xff]
    %v529 = vld [vmem:[#allocation13 + $0x78] sm:$0xff]
    %v530 = vld [vmem:[#allocation3] sm:$0xff]
    %531 = vmatpush.msra.mxu0 %v529
    %532 = vmatpush.msra.mxu0 %v528
    %533 = vmatpush.msra.mxu0 %v527
    %534 = vmatpush.msra.mxu0 %v526
    %535 = vmatpush.msra.mxu0 %v525
    %536 = vmatpush.msra.mxu0 %v524
    %537 = vmatpush.msra.mxu0 %v523
    %538 = vmatpush.msra.mxu0 %v522
    %539 = vmatpush.msra.mxu0 %v521
    %540 = vmatpush.msra.mxu0 %v520
    %541 = vmatpush.msra.mxu0 %v519
    %542 = vmatpush.msra.mxu0 %v518
    %543 = vmatpush.msra.mxu0 %v517
    %544 = vmatpush.msra.mxu0 %v516
    %545 = vmatpush.msra.mxu0 %v515
    %546 = vmatpush.msra.mxu0 %v514
    %547 = vmatmul.f32.gmra.mxu0 0.0
    %v548 = vpop.f32.mrf.mxu0
    %v549 = vadd.f32 0.0, %v548
    %550 = vdwg.mxu0
    %v551 = vadd.f32 %v530, %v549
    %v552 = vtanh.pop %v551
    %553 = vst [vmem:[#allocation3] sm:$0xff] %v552
    %s554 = scalar_lea.vmem [#allocation3], 8
    %v555 = vld [vmem:[%s554] sm:$0xff]
    %556 = vmatpush.msra.mxu0 %v529
    %557 = vmatpush.msra.mxu0 %v528
    %558 = vmatpush.msra.mxu0 %v527
    %559 = vmatpush.msra.mxu0 %v526
    %560 = vmatpush.msra.mxu0 %v525
    %561 = vmatpush.msra.mxu0 %v524
    %562 = vmatpush.msra.mxu0 %v523
    %563 = vmatpush.msra.mxu0 %v522
    %564 = vmatpush.msra.mxu0 %v521
    %565 = vmatpush.msra.mxu0 %v520
    %566 = vmatpush.msra.mxu0 %v519
    %567 = vmatpush.msra.mxu0 %v518
    %568 = vmatpush.msra.mxu0 %v517
    %569 = vmatpush.msra.mxu0 %v516
    %570 = vmatpush.msra.mxu0 %v515
    %571 = vmatpush.msra.mxu0 %v514
    %572 = vmatmul.f32.gmra.mxu0 %v552
    %v573 = vpop.f32.mrf.mxu0
    %v574 = vadd.f32 0.0, %v573
    %575 = vdwg.mxu0
    %v576 = vadd.f32 %v555, %v574
    %v577 = vtanh.pop %v576
    %578 = vst [vmem:[%s554] sm:$0xff] %v577
    %s579 = scalar_lea.vmem [#allocation3], 16
    %v580 = vld [vmem:[%s579] sm:$0xff]
    %581 = vmatpush.msra.mxu0 %v529
    %582 = vmatpush.msra.mxu0 %v528
    %583 = vmatpush.msra.mxu0 %v527
    %584 = vmatpush.msra.mxu0 %v526
    %585 = vmatpush.msra.mxu0 %v525
    %586 = vmatpush.msra.mxu0 %v524
    %587 = vmatpush.msra.mxu0 %v523
    %588 = vmatpush.msra.mxu0 %v522
    %589 = vmatpush.msra.mxu0 %v521
    %590 = vmatpush.msra.mxu0 %v520
    %591 = vmatpush.msra.mxu0 %v519
    %592 = vmatpush.msra.mxu0 %v518
    %593 = vmatpush.msra.mxu0 %v517
    %594 = vmatpush.msra.mxu0 %v516
    %595 = vmatpush.msra.mxu0 %v515
    %596 = vmatpush.msra.mxu0 %v514
    %597 = vmatmul.f32.gmra.mxu0 %v577
    %v598 = vpop.f32.mrf.mxu0
    %v599 = vadd.f32 0.0, %v598
    %600 = vdwg.mxu0
    %v601 = vadd.f32 %v580, %v599
    %v602 = vtanh.pop %v601
    %603 = vst [vmem:[%s579] sm:$0xff] %v602
    %s604 = scalar_lea.vmem [#allocation3], 24
    %v605 = vld [vmem:[%s604] sm:$0xff]
    %606 = vmatpush.msra.mxu0 %v529
    %607 = vmatpush.msra.mxu0 %v528
    %608 = vmatpush.msra.mxu0 %v527
    %609 = vmatpush.msra.mxu0 %v526
    %610 = vmatpush.msra.mxu0 %v525
    %611 = vmatpush.msra.mxu0 %v524
    %612 = vmatpush.msra.mxu0 %v523
    %613 = vmatpush.msra.mxu0 %v522
    %614 = vmatpush.msra.mxu0 %v521
    %615 = vmatpush.msra.mxu0 %v520
    %616 = vmatpush.msra.mxu0 %v519
    %617 = vmatpush.msra.mxu0 %v518
    %618 = vmatpush.msra.mxu0 %v517
    %619 = vmatpush.msra.mxu0 %v516
    %620 = vmatpush.msra.mxu0 %v515
    %621 = vmatpush.msra.mxu0 %v514
    %622 = vmatmul.f32.gmra.mxu0 %v602
    %v623 = vpop.f32.mrf.mxu0
    %v624 = vadd.f32 0.0, %v623
    %625 = vdwg.mxu0
    %v626 = vadd.f32 %v605, %v624
    %v627 = vtanh.pop %v626
    %628 = vst [vmem:[%s604] sm:$0xff] %v627
    %s629 = scalar_lea.vmem [#allocation3], 32
    %v630 = vld [vmem:[%s629] sm:$0xff]
    %631 = vmatpush.msra.mxu0 %v529
    %632 = vmatpush.msra.mxu0 %v528
    %633 = vmatpush.msra.mxu0 %v527
    %634 = vmatpush.msra.mxu0 %v526
    %635 = vmatpush.msra.mxu0 %v525
    %636 = vmatpush.msra.mxu0 %v524
    %637 = vmatpush.msra.mxu0 %v523
    %638 = vmatpush.msra.mxu0 %v522
    %639 = vmatpush.msra.mxu0 %v521
    %640 = vmatpush.msra.mxu0 %v520
    %641 = vmatpush.msra.mxu0 %v519
    %642 = vmatpush.msra.mxu0 %v518
    %643 = vmatpush.msra.mxu0 %v517
    %644 = vmatpush.msra.mxu0 %v516
    %645 = vmatpush.msra.mxu0 %v515
    %646 = vmatpush.msra.mxu0 %v514
    %647 = vmatmul.f32.gmra.mxu0 %v627
    %v648 = vpop.f32.mrf.mxu0
    %v649 = vadd.f32 0.0, %v648
    %650 = vdwg.mxu0
    %v651 = vadd.f32 %v630, %v649
    %v652 = vtanh.pop %v651
    %653 = vst [vmem:[%s629] sm:$0xff] %v652
    %s654 = scalar_lea.vmem [#allocation3], 40
    %v655 = vld [vmem:[%s654] sm:$0xff]
    %656 = vmatpush.msra.mxu0 %v529
    %657 = vmatpush.msra.mxu0 %v528
    %658 = vmatpush.msra.mxu0 %v527
    %659 = vmatpush.msra.mxu0 %v526
    %660 = vmatpush.msra.mxu0 %v525
    %661 = vmatpush.msra.mxu0 %v524
    %662 = vmatpush.msra.mxu0 %v523
    %663 = vmatpush.msra.mxu0 %v522
    %664 = vmatpush.msra.mxu0 %v521
    %665 = vmatpush.msra.mxu0 %v520
    %666 = vmatpush.msra.mxu0 %v519
    %667 = vmatpush.msra.mxu0 %v518
    %668 = vmatpush.msra.mxu0 %v517
    %669 = vmatpush.msra.mxu0 %v516
    %670 = vmatpush.msra.mxu0 %v515
    %671 = vmatpush.msra.mxu0 %v514
    %672 = vmatmul.f32.gmra.mxu0 %v652
    %v673 = vpop.f32.mrf.mxu0
    %v674 = vadd.f32 0.0, %v673
    %675 = vdwg.mxu0
    %v676 = vadd.f32 %v655, %v674
    %v677 = vtanh.pop %v676
    %678 = vst [vmem:[%s654] sm:$0xff] %v677
    %s679 = scalar_lea.vmem [#allocation3], 48
    %v680 = vld [vmem:[%s679] sm:$0xff]
    %681 = vmatpush.msra.mxu0 %v529
    %682 = vmatpush.msra.mxu0 %v528
    %683 = vmatpush.msra.mxu0 %v527
    %684 = vmatpush.msra.mxu0 %v526
    %685 = vmatpush.msra.mxu0 %v525
    %686 = vmatpush.msra.mxu0 %v524
    %687 = vmatpush.msra.mxu0 %v523
    %688 = vmatpush.msra.mxu0 %v522
    %689 = vmatpush.msra.mxu0 %v521
    %690 = vmatpush.msra.mxu0 %v520
    %691 = vmatpush.msra.mxu0 %v519
    %692 = vmatpush.msra.mxu0 %v518
    %693 = vmatpush.msra.mxu0 %v517
    %694 = vmatpush.msra.mxu0 %v516
    %695 = vmatpush.msra.mxu0 %v515
    %696 = vmatpush.msra.mxu0 %v514
    %697 = vmatmul.f32.gmra.mxu0 %v677
    %v698 = vpop.f32.mrf.mxu0
    %v699 = vadd.f32 0.0, %v698
    %700 = vdwg.mxu0
    %v701 = vadd.f32 %v680, %v699
    %v702 = vtanh.pop %v701
    %703 = vst [vmem:[%s679] sm:$0xff] %v702
    %s704 = scalar_lea.vmem [#allocation3], 56
    %v705 = vld [vmem:[%s704] sm:$0xff]
    %706 = vmatpush.msra.mxu0 %v529
    %707 = vmatpush.msra.mxu0 %v528
    %708 = vmatpush.msra.mxu0 %v527
    %709 = vmatpush.msra.mxu0 %v526
    %710 = vmatpush.msra.mxu0 %v525
    %711 = vmatpush.msra.mxu0 %v524
    %712 = vmatpush.msra.mxu0 %v523
    %713 = vmatpush.msra.mxu0 %v522
    %714 = vmatpush.msra.mxu0 %v521
    %715 = vmatpush.msra.mxu0 %v520
    %716 = vmatpush.msra.mxu0 %v519
    %717 = vmatpush.msra.mxu0 %v518
    %718 = vmatpush.msra.mxu0 %v517
    %719 = vmatpush.msra.mxu0 %v516
    %720 = vmatpush.msra.mxu0 %v515
    %721 = vmatpush.msra.mxu0 %v514
    %722 = vmatmul.f32.gmra.mxu0 %v702
    %v723 = vpop.f32.mrf.mxu0
    %v724 = vadd.f32 0.0, %v723
    %725 = vdwg.mxu0
    %v726 = vadd.f32 %v705, %v724
    %v727 = vtanh.pop %v726
    %728 = vst [vmem:[%s704] sm:$0xff] %v727
    %v729 = vld [vmem:[#allocation3] sm:$0xff]
    %v730 = vld [vmem:[#allocation3 + $0x8] sm:$0xff]
    %v731 = vld [vmem:[#allocation3 + $0x10] sm:$0xff]
    %v732 = vld [vmem:[#allocation3 + $0x18] sm:$0xff]
    %v733 = vld [vmem:[#allocation3 + $0x20] sm:$0xff]
    %v734 = vld [vmem:[#allocation3 + $0x28] sm:$0xff]
    %v735 = vld [vmem:[#allocation3 + $0x30] sm:$0xff]
    %v736 = vld [vmem:[#allocation3 + $0x38] sm:$0xff]
    %v737 = vld [vmem:[#allocation15] sm:$0xff]
    %v738 = vld [vmem:[#allocation15 + $0x8] sm:$0xff]
    %v739 = vld [vmem:[#allocation15 + $0x10] sm:$0xff]
    %v740 = vld [vmem:[#allocation15 + $0x18] sm:$0xff]
    %v741 = vld [vmem:[#allocation15 + $0x20] sm:$0xff]
    %v742 = vld [vmem:[#allocation15 + $0x28] sm:$0xff]
    %v743 = vld [vmem:[#allocation15 + $0x30] sm:$0xff]
    %v744 = vld [vmem:[#allocation15 + $0x38] sm:$0xff]
    %v745 = vld [vmem:[#allocation15 + $0x40] sm:$0xff]
    %v746 = vld [vmem:[#allocation15 + $0x48] sm:$0xff]
    %v747 = vld [vmem:[#allocation15 + $0x50] sm:$0xff]
    %v748 = vld [vmem:[#allocation15 + $0x58] sm:$0xff]
    %v749 = vld [vmem:[#allocation15 + $0x60] sm:$0xff]
    %v750 = vld [vmem:[#allocation15 + $0x68] sm:$0xff]
    %v751 = vld [vmem:[#allocation15 + $0x70] sm:$0xff]
    %v752 = vld [vmem:[#allocation15 + $0x78] sm:$0xff]
    %v753 = vld [vmem:[%s9] sm:$0x1]
    %v755 = vperm.slane %v753, 0
    %757 = vmatpush.msra.mxu0 %v752
    %758 = vmatpush.msra.mxu0 %v751
    %759 = vmatpush.msra.mxu0 %v750
    %760 = vmatpush.msra.mxu0 %v749
    %761 = vmatpush.msra.mxu0 %v748
    %762 = vmatpush.msra.mxu0 %v747
    %763 = vmatpush.msra.mxu0 %v746
    %764 = vmatpush.msra.mxu0 %v745
    %765 = vmatpush.msra.mxu0 %v744
    %766 = vmatpush.msra.mxu0 %v743
    %767 = vmatpush.msra.mxu0 %v742
    %768 = vmatpush.msra.mxu0 %v741
    %769 = vmatpush.msra.mxu0 %v740
    %770 = vmatpush.msra.mxu0 %v739
    %771 = vmatpush.msra.mxu0 %v738
    %772 = vmatpush.msra.mxu0 %v737
    %773 = vmatmul.f32.gmra.mxu0 %v729
    %v774 = vpop.f32.mrf.mxu0
    %v775 = vadd.f32 %v755, %v774
    %776 = vmatmul.f32.gmra.mxu0 %v730
    %v777 = vpop.f32.mrf.mxu0
    %v778 = vadd.f32 %v755, %v777
    %779 = vmatmul.f32.gmra.mxu0 %v731
    %v780 = vpop.f32.mrf.mxu0
    %v781 = vadd.f32 %v755, %v780
    %782 = vmatmul.f32.gmra.mxu0 %v732
    %v783 = vpop.f32.mrf.mxu0
    %v784 = vadd.f32 %v755, %v783
    %785 = vmatmul.f32.gmra.mxu0 %v733
    %v786 = vpop.f32.mrf.mxu0
    %v787 = vadd.f32 %v755, %v786
    %788 = vmatmul.f32.gmra.mxu0 %v734
    %v789 = vpop.f32.mrf.mxu0
    %v790 = vadd.f32 %v755, %v789
    %791 = vmatmul.f32.gmra.mxu0 %v735
    %v792 = vpop.f32.mrf.mxu0
    %v793 = vadd.f32 %v755, %v792
    %794 = vmatmul.f32.gmra.mxu0 %v736
    %v795 = vpop.f32.mrf.mxu0
    %v796 = vadd.f32 %v755, %v795
    %797 = vdwg.mxu0
    %v798 = vxor.u32 %v775, 2147483648
    %v799 = vxor.u32 %v778, 2147483648
    %v800 = vxor.u32 %v781, 2147483648
    %v801 = vxor.u32 %v784, 2147483648
    %v802 = vxor.u32 %v787, 2147483648
    %v803 = vxor.u32 %v790, 2147483648
    %v804 = vxor.u32 %v793, 2147483648
    %v805 = vxor.u32 %v796, 2147483648
    %v806 = vmul.f32 %v798, 1.442695
    %v807 = vpow.pop %v806
    %v808 = vmul.f32 %v799, 1.442695
    %v809 = vpow.pop %v808
    %v810 = vmul.f32 %v800, 1.442695
    %v811 = vpow.pop %v810
    %v812 = vmul.f32 %v801, 1.442695
    %v813 = vpow.pop %v812
    %v814 = vmul.f32 %v802, 1.442695
    %v815 = vpow.pop %v814
    %v816 = vmul.f32 %v803, 1.442695
    %v817 = vpow.pop %v816
    %v818 = vmul.f32 %v804, 1.442695
    %v819 = vpow.pop %v818
    %v820 = vmul.f32 %v805, 1.442695
    %v821 = vpow.pop %v820
    %v822 = vadd.f32 %v807, 1.0
    %v823 = vadd.f32 %v809, 1.0
    %v824 = vadd.f32 %v811, 1.0
    %v825 = vadd.f32 %v813, 1.0
    %v826 = vadd.f32 %v815, 1.0
    %v827 = vadd.f32 %v817, 1.0
    %v828 = vadd.f32 %v819, 1.0
    %v829 = vadd.f32 %v821, 1.0
    %v830 = vrcp.pop %v822
    %v831 = vmul.f32 %v822, %v830
    %v832 = vsub.f32 1.0, %v831
    %v833 = vmul.f32 %v830, %v832
    %v834 = vadd.f32 %v830, %v833
    %vm835 = vweird.f32 %v822
    %vm836 = vweird.f32 %v830
    %vm837 = vmor %vm835, %vm836
    %v838 = vsel %vm837, %v830, %v834
    %v839 = vand.u32 2147483647, %v822
    %vm840 = vcmp.eq.f32.partialorder %v839, 8.507059e+37
    %v841 = vand.u32 %v822, 2147483648
    %v842 = vor.u32 1.1754944e-38, %v841
    %v843 = vsel %vm840, %v842, %v838
    %v844 = vmul.f32 1.0, %v843
    %v845 = vrcp.pop %v823
    %v846 = vmul.f32 %v823, %v845
    %v847 = vsub.f32 1.0, %v846
    %v848 = vmul.f32 %v845, %v847
    %v849 = vadd.f32 %v845, %v848
    %vm850 = vweird.f32 %v823
    %vm851 = vweird.f32 %v845
    %vm852 = vmor %vm850, %vm851
    %v853 = vsel %vm852, %v845, %v849
    %v854 = vand.u32 2147483647, %v823
    %vm855 = vcmp.eq.f32.partialorder %v854, 8.507059e+37
    %v856 = vand.u32 %v823, 2147483648
    %v857 = vor.u32 1.1754944e-38, %v856
    %v858 = vsel %vm855, %v857, %v853
    %v859 = vmul.f32 1.0, %v858
    %v860 = vrcp.pop %v824
    %v861 = vmul.f32 %v824, %v860
    %v862 = vsub.f32 1.0, %v861
    %v863 = vmul.f32 %v860, %v862
    %v864 = vadd.f32 %v860, %v863
    %vm865 = vweird.f32 %v824
    %vm866 = vweird.f32 %v860
    %vm867 = vmor %vm865, %vm866
    %v868 = vsel %vm867, %v860, %v864
    %v869 = vand.u32 2147483647, %v824
    %vm870 = vcmp.eq.f32.partialorder %v869, 8.507059e+37
    %v871 = vand.u32 %v824, 2147483648
    %v872 = vor.u32 1.1754944e-38, %v871
    %v873 = vsel %vm870, %v872, %v868
    %v874 = vmul.f32 1.0, %v873
    %v875 = vrcp.pop %v825
    %v876 = vmul.f32 %v825, %v875
    %v877 = vsub.f32 1.0, %v876
    %v878 = vmul.f32 %v875, %v877
    %v879 = vadd.f32 %v875, %v878
    %vm880 = vweird.f32 %v825
    %vm881 = vweird.f32 %v875
    %vm882 = vmor %vm880, %vm881
    %v883 = vsel %vm882, %v875, %v879
    %v884 = vand.u32 2147483647, %v825
    %vm885 = vcmp.eq.f32.partialorder %v884, 8.507059e+37
    %v886 = vand.u32 %v825, 2147483648
    %v887 = vor.u32 1.1754944e-38, %v886
    %v888 = vsel %vm885, %v887, %v883
    %v889 = vmul.f32 1.0, %v888
    %v890 = vrcp.pop %v826
    %v891 = vmul.f32 %v826, %v890
    %v892 = vsub.f32 1.0, %v891
    %v893 = vmul.f32 %v890, %v892
    %v894 = vadd.f32 %v890, %v893
    %vm895 = vweird.f32 %v826
    %vm896 = vweird.f32 %v890
    %vm897 = vmor %vm895, %vm896
    %v898 = vsel %vm897, %v890, %v894
    %v899 = vand.u32 2147483647, %v826
    %vm900 = vcmp.eq.f32.partialorder %v899, 8.507059e+37
    %v901 = vand.u32 %v826, 2147483648
    %v902 = vor.u32 1.1754944e-38, %v901
    %v903 = vsel %vm900, %v902, %v898
    %v904 = vmul.f32 1.0, %v903
    %v905 = vrcp.pop %v827
    %v906 = vmul.f32 %v827, %v905
    %v907 = vsub.f32 1.0, %v906
    %v908 = vmul.f32 %v905, %v907
    %v909 = vadd.f32 %v905, %v908
    %vm910 = vweird.f32 %v827
    %vm911 = vweird.f32 %v905
    %vm912 = vmor %vm910, %vm911
    %v913 = vsel %vm912, %v905, %v909
    %v914 = vand.u32 2147483647, %v827
    %vm915 = vcmp.eq.f32.partialorder %v914, 8.507059e+37
    %v916 = vand.u32 %v827, 2147483648
    %v917 = vor.u32 1.1754944e-38, %v916
    %v918 = vsel %vm915, %v917, %v913
    %v919 = vmul.f32 1.0, %v918
    %v920 = vrcp.pop %v828
    %v921 = vmul.f32 %v828, %v920
    %v922 = vsub.f32 1.0, %v921
    %v923 = vmul.f32 %v920, %v922
    %v924 = vadd.f32 %v920, %v923
    %vm925 = vweird.f32 %v828
    %vm926 = vweird.f32 %v920
    %vm927 = vmor %vm925, %vm926
    %v928 = vsel %vm927, %v920, %v924
    %v929 = vand.u32 2147483647, %v828
    %vm930 = vcmp.eq.f32.partialorder %v929, 8.507059e+37
    %v931 = vand.u32 %v828, 2147483648
    %v932 = vor.u32 1.1754944e-38, %v931
    %v933 = vsel %vm930, %v932, %v928
    %v934 = vmul.f32 1.0, %v933
    %v935 = vrcp.pop %v829
    %v936 = vmul.f32 %v829, %v935
    %v937 = vsub.f32 1.0, %v936
    %v938 = vmul.f32 %v935, %v937
    %v939 = vadd.f32 %v935, %v938
    %vm940 = vweird.f32 %v829
    %vm941 = vweird.f32 %v935
    %vm942 = vmor %vm940, %vm941
    %v943 = vsel %vm942, %v935, %v939
    %v944 = vand.u32 2147483647, %v829
    %vm945 = vcmp.eq.f32.partialorder %v944, 8.507059e+37
    %v946 = vand.u32 %v829, 2147483648
    %v947 = vor.u32 1.1754944e-38, %v946
    %v948 = vsel %vm945, %v947, %v943
    %v949 = vmul.f32 1.0, %v948
    %v950 = vld [vmem:[#allocation7] sm:$0xff]
    %v951 = vld [vmem:[#allocation7 + $0x8] sm:$0xff]
    %v952 = vld [vmem:[#allocation7 + $0x10] sm:$0xff]
    %v953 = vld [vmem:[#allocation7 + $0x18] sm:$0xff]
    %v954 = vld [vmem:[#allocation7 + $0x20] sm:$0xff]
    %v955 = vld [vmem:[#allocation7 + $0x28] sm:$0xff]
    %v956 = vld [vmem:[#allocation7 + $0x30] sm:$0xff]
    %v957 = vld [vmem:[#allocation7 + $0x38] sm:$0xff]
    %v958 = vmul.f32 %v844, %v950
    %v959 = vmul.f32 %v859, %v951
    %v960 = vmul.f32 %v874, %v952
    %v961 = vmul.f32 %v889, %v953
    %v962 = vmul.f32 %v904, %v954
    %v963 = vmul.f32 %v919, %v955
    %v964 = vmul.f32 %v934, %v956
    %v965 = vmul.f32 %v949, %v957
    %966 = vst [vmem:[#allocation16] sm:$0xff] %v958
    %967 = vst [vmem:[#allocation16 + $0x8] sm:$0xff] %v959
    %968 = vst [vmem:[#allocation16 + $0x10] sm:$0xff] %v960
    %969 = vst [vmem:[#allocation16 + $0x18] sm:$0xff] %v961
    %970 = vst [vmem:[#allocation16 + $0x20] sm:$0xff] %v962
    %971 = vst [vmem:[#allocation16 + $0x28] sm:$0xff] %v963
    %972 = vst [vmem:[#allocation16 + $0x30] sm:$0xff] %v964
    %973 = vst [vmem:[#allocation16 + $0x38] sm:$0xff] %v965
    // Predicated region
    $region70: #{tpu_custom_call.1} parent=1 // pred_check
      _
    $region71: #{tpu_custom_call.1} parent=1 // pred_check_branch
      %975 = sbr.rel (0) target = $region73
    $region72: #{tpu_custom_call.1} parent=1 // pred_region
      %977 = vsyncadd [#allocation6], 0
      %s978 = sshll.u32 [#allocation16], 4
      %s979 = int_to_ptr.vmem [resolvable:$true] %s978
      %s980 = sshll.u32 %s10, 4
      %s981 = int_to_ptr.hbm [resolvable:$true] %s980
      %986 = dma.vmem_to_hbm [thread:$0]  %s979, 1024, %s981, [#allocation6], 128, 128, 8
    $region73: #{tpu_custom_call.1} parent=1 // pred_fallthru
      _
    // Predicated region
    $region74: #{tpu_custom_call.1} parent=1 // pred_check
      _
    $region75: #{tpu_custom_call.1} parent=1 // pred_check_branch
      %988 = sbr.rel (0) target = $region77
    $region76: #{tpu_custom_call.1} parent=1 // pred_region
      %990 = dma.done [#allocation6], 1024
    $region77: #{tpu_custom_call.1} parent=1 // pred_fallthru
      _
    %991 = vsyncpa [#allocation5], 1
    %992 = vsyncpa [#allocation8], 1
    %993 = vsyncpa [#allocation11], 1
    %994 = vsyncpa [#allocation14], 1
    %995 = vsyncpa [#allocation6], 1

</llo_original>
